<compile_context>
chip_gen: v6e
topology: v6e:2x2x1
jax: 0.10.0
libtpu: 0.0.40
codegen_flags: <defaults>
</compile_context>

<pallas_src>
import math
import functools

import jax
import jax.numpy as jnp
from jax.experimental import pallas as pl
from jax.experimental.pallas import tpu as pltpu

ACT_DTYPE = jnp.bfloat16

# -----------------------------------------------------------------------------
# Pallas kernel: tiled matmul + bias (used for every conv / deconv / linear)
# -----------------------------------------------------------------------------

def _matmul_bias_kernel(a_ref, b_ref, bias_ref, o_ref, acc_ref):
    @pl.when(pl.program_id(2) == 0)
    def _():
        acc_ref[...] = jnp.zeros_like(acc_ref)

    acc_ref[...] += jnp.dot(a_ref[...], b_ref[...],
                            preferred_element_type=jnp.float32)

    @pl.when(pl.program_id(2) == pl.num_programs(2) - 1)
    def _():
        o_ref[...] = (acc_ref[...] + bias_ref[...]).astype(o_ref.dtype)


def _round_up(x, m):
    return (x + m - 1) // m * m


def _pick_tiles(M, K, N):
    """Adaptive tile sizes: single full-extent K/N blocks when small, big M tiles."""
    Kp = _round_up(K, 128)
    if Kp > 1024:
        tk = 512
        Kp = _round_up(K, tk)
    else:
        tk = Kp
    Np = _round_up(N, 128)
    if Np > 512:
        tn = 256
        Np = _round_up(N, tn)
    else:
        tn = Np
    tm = min(512, _round_up(M, 128))
    Mp = _round_up(M, tm)
    return Mp, Kp, Np, tm, tk, tn


def _matmul_bias(a, b, bias, out_dtype):
    """a:(M,K) bf16 @ b:(K,N) bf16 + bias:(N,) f32 -> (M,N) out_dtype (Pallas)."""
    M, K = a.shape
    _, N = b.shape
    Mp, Kp, Np, tm, tk, tn = _pick_tiles(M, K, N)

    ap = a if (Mp == M and Kp == K) else jnp.pad(a, ((0, Mp - M), (0, Kp - K)))
    bp = b if (Kp == K and Np == N) else jnp.pad(b, ((0, Kp - K), (0, Np - N)))
    biasp = jnp.pad(bias.astype(jnp.float32), (0, Np - N)).reshape(1, Np)

    out = pl.pallas_call(
        _matmul_bias_kernel,
        out_shape=jax.ShapeDtypeStruct((Mp, Np), out_dtype),
        grid_spec=pltpu.PrefetchScalarGridSpec(
            num_scalar_prefetch=0,
            grid=(Mp // tm, Np // tn, Kp // tk),
            in_specs=[
                pl.BlockSpec((tm, tk), lambda i, j, k: (i, k)),
                pl.BlockSpec((tk, tn), lambda i, j, k: (k, j)),
                pl.BlockSpec((1, tn), lambda i, j, k: (0, j)),
            ],
            out_specs=pl.BlockSpec((tm, tn), lambda i, j, k: (i, j)),
            scratch_shapes=[pltpu.VMEM((tm, tn), jnp.float32)],
        ),
        compiler_params=pltpu.CompilerParams(
            dimension_semantics=("parallel", "parallel", "arbitrary")),
    )(ap, bp, biasp)
    if Mp != M or Np != N:
        out = out[:M, :N]
    return out


# -----------------------------------------------------------------------------
# Conv / deconv built on the Pallas matmul (im2col + pre-activation BN fusion)
# -----------------------------------------------------------------------------

@functools.partial(jax.jit,
                   static_argnames=("stride", "padding", "kh", "kw", "in_act"))
def _conv2d_impl(x, wk, bias, in_scale, in_shift, stride, padding, kh, kw, in_act):
    # x: (B,H,W,Cin) bf16 ; wk: (kh*kw*Cin, Cout) bf16 ; bias: (Cout,) f32
    B, H, W, Cin = x.shape
    Cout = wk.shape[1]
    if in_act:   # fused pre-activation BatchNorm + ReLU (applied before spatial pad)
        x = jnp.maximum(x.astype(jnp.float32) * in_scale + in_shift, 0.0)
    x = x.astype(ACT_DTYPE)
    if padding:
        x = jnp.pad(x, ((0, 0), (padding, padding), (padding, padding), (0, 0)))
    Ho = (H + 2 * padding - kh) // stride + 1
    Wo = (W + 2 * padding - kw) // stride + 1
    if kh == 1 and kw == 1 and stride == 1 and padding == 0:
        a = x.reshape(B * Ho * Wo, Cin)
    else:
        patches = [x[:, ki:ki + stride * Ho:stride, kj:kj + stride * Wo:stride, :]
                   for ki in range(kh) for kj in range(kw)]
        a = jnp.concatenate(patches, axis=-1).reshape(B * Ho * Wo, kh * kw * Cin)
    out = _matmul_bias(a, wk, bias, ACT_DTYPE)
    return out.reshape(B, Ho, Wo, Cout)


@functools.partial(jax.jit, static_argnames=("output_padding", "in_act"))
def _deconv_s2_impl(x, wp, bias, in_scale, in_shift, output_padding, in_act):
    """ConvTranspose2d(k=3, stride=2, pad=1, output_padding) via 4-phase decomposition.

    Output-parity phases (EE, EO, OE, OO) are computed with ONE matmul over the
    concatenation of 4 shifted input copies; no zero-dilated input is built.
    """
    B, H, W, Cin = x.shape
    Cout = wp.shape[1] // 4
    if in_act:
        x = jnp.maximum(x.astype(jnp.float32) * in_scale + in_shift, 0.0)
    x = x.astype(ACT_DTYPE)
    xr = jnp.pad(x, ((0, 0), (0, 1), (0, 1), (0, 0)))
    x00 = xr[:, :H, :W]          # x[m, n]
    x01 = xr[:, :H, 1:W + 1]     # x[m, n+1]
    x10 = xr[:, 1:H + 1, :W]     # x[m+1, n]
    x11 = xr[:, 1:H + 1, 1:W + 1]  # x[m+1, n+1]
    a = jnp.concatenate([x00, x01, x10, x11], axis=-1).reshape(B * H * W, 4 * Cin)
    out = _matmul_bias(a, wp, jnp.tile(bias.astype(jnp.float32), 4), ACT_DTYPE)
    # interleave phases: columns are [EE | EO | OE | OO]
    y = out.reshape(B, H, W, 2, 2, Cout)
    y = jnp.transpose(y, (0, 1, 3, 2, 4, 5)).reshape(B, 2 * H, 2 * W, Cout)
    Ho = 2 * H - 1 + output_padding
    Wo = 2 * W - 1 + output_padding
    return y[:, :Ho, :Wo, :]


def _bn_scale_shift(bn):
    scale = bn["gamma"] * jax.lax.rsqrt(bn["var"] + 1e-5)
    shift = bn["beta"] - bn["mean"] * scale
    return scale, shift


def conv2d(x, cp, *, stride=1, padding=0, in_bn=None):
    if in_bn is not None:
        s, b = _bn_scale_shift(in_bn)
        in_act = True
    else:
        s = b = jnp.zeros((1,), jnp.float32)
        in_act = False
    return _conv2d_impl(x, cp["wk"], cp["b"], s, b,
                        stride=stride, padding=padding,
                        kh=cp["kh"], kw=cp["kw"], in_act=in_act)


def conv_transpose2d_s2(x, dp, *, output_padding, in_bn=None):
    if in_bn is not None:
        s, b = _bn_scale_shift(in_bn)
        in_act = True
    else:
        s = b = jnp.zeros((1,), jnp.float32)
        in_act = False
    return _deconv_s2_impl(x, dp["wp"], dp["b"], s, b,
                           output_padding=output_padding, in_act=in_act)


# -----------------------------------------------------------------------------
# Elementwise glue (standalone BN+ReLU, pooling, classifier head)
# -----------------------------------------------------------------------------

@jax.jit
def _bn_relu_impl(x, gamma, beta, mean, var):
    scale = gamma * jax.lax.rsqrt(var + 1e-5)
    shift = beta - mean * scale
    y = x.astype(jnp.float32) * scale + shift
    return jnp.maximum(y, 0.0).astype(ACT_DTYPE)


def bn_relu(x, p):
    return _bn_relu_impl(x, p["gamma"], p["beta"], p["mean"], p["var"])


@jax.jit
def _avg_pool2x2_impl(x):
    B, H, W, C = x.shape
    y = x.astype(jnp.float32).reshape(B, H // 2, 2, W // 2, 2, C).mean(axis=(2, 4))
    return y.astype(ACT_DTYPE)


@jax.jit
def _head_impl(x, gamma, beta, mean, var, wk, bias):
    # bn2 -> relu -> avg_pool2d(7) -> flatten (NCHW order) -> linear
    scale = gamma * jax.lax.rsqrt(var + 1e-5)
    shift = beta - mean * scale
    y = jnp.maximum(x.astype(jnp.float32) * scale + shift, 0.0)
    B, H, W, C = y.shape
    Ho, Wo = H // 7, W // 7
    y = y[:, :Ho * 7, :Wo * 7, :].reshape(B, Ho, 7, Wo, 7, C).mean(axis=(2, 4))
    y = jnp.transpose(y, (0, 3, 1, 2)).reshape(B, -1)
    return _matmul_bias(y.astype(ACT_DTYPE), wk, bias, jnp.float32)


# -----------------------------------------------------------------------------
# Deterministic parameter initialization (weights pre-packed for the kernel)
# -----------------------------------------------------------------------------

class _Keys:
    def __init__(self, seed=0):
        self._key = jax.random.PRNGKey(seed)

    def next(self):
        self._key, sub = jax.random.split(self._key)
        return sub


def _normal(kg, shape, std):
    return std * jax.random.normal(kg.next(), shape, jnp.float32)


def init_conv(kg, cin, cout, k):
    fan_in = cin * k * k
    w = _normal(kg, (cout, cin, k, k), math.sqrt(2.0 / fan_in))
    b = _normal(kg, (cout,), 0.01)
    wk = jnp.transpose(w, (2, 3, 1, 0)).reshape(k * k * cin, cout).astype(ACT_DTYPE)
    return {"wk": wk, "b": b, "kh": k, "kw": k}


def init_convT(kg, cin, cout, k=3):
    # PyTorch ConvTranspose2d weight layout (Cin, Cout, kh, kw); stride-2, pad-1
    # kernel pre-packed into the 4-phase (4*Cin, 4*Cout) matrix.
    fan_in = cin * k * k
    w = _normal(kg, (cin, cout, k, k), math.sqrt(2.0 / fan_in))
    b = _normal(kg, (cout,), 0.01)
    Z = jnp.zeros((cin, cout), jnp.float32)
    t = lambda ki, kj: w[:, :, ki, kj]
    #            EE        EO        OE        OO
    wp = jnp.block([
        [t(1, 1), t(1, 2), t(2, 1), t(2, 2)],   # x[m,   n  ]
        [Z,       t(1, 0), Z,       t(2, 0)],   # x[m,   n+1]
        [Z,       Z,       t(0, 1), t(0, 2)],   # x[m+1, n  ]
        [Z,       Z,       Z,       t(0, 0)],   # x[m+1, n+1]
    ]).astype(ACT_DTYPE)
    return {"wp": wp, "b": b}


def init_linear(kg, cin, cout):
    w = _normal(kg, (cout, cin), math.sqrt(1.0 / cin))
    b = _normal(kg, (cout,), 0.01)
    return {"wk": jnp.transpose(w).astype(ACT_DTYPE), "b": b}


def init_bn(kg, c):
    return {"gamma": 1.0 + _normal(kg, (c,), 0.1),
            "beta": _normal(kg, (c,), 0.1),
            "mean": _normal(kg, (c,), 0.1),
            "var": 1.0 + jnp.abs(_normal(kg, (c,), 0.1))}


# -----------------------------------------------------------------------------
# Sub-modules (mirroring the PyTorch classes; pre-activation BNs are fused
# into the consuming conv's operand pipeline)
# -----------------------------------------------------------------------------

def init_residual(kg, in_planes, out_planes, stride=1):
    return {"bn": init_bn(kg, in_planes),
            "conv_a": init_conv(kg, in_planes, out_planes, 3),
            "bn_mid": init_bn(kg, out_planes),
            "conv_b": init_conv(kg, out_planes, out_planes, 3),
            "stride": stride,
            "shortcut": init_conv(kg, in_planes, out_planes, 1) if stride > 1 else None}


def residual_fwd(p, x):
    if p["shortcut"] is not None:
        residual = conv2d(x, p["shortcut"], stride=p["stride"], padding=0,
                          in_bn=p["bn"])
    else:
        residual = bn_relu(x, p["bn"])
    h = conv2d(x, p["conv_a"], stride=p["stride"], padding=1, in_bn=p["bn"])
    h = conv2d(h, p["conv_b"], stride=1, padding=1, in_bn=p["bn_mid"])
    return h + residual


def init_unet_conv(kg, in_planes, out_planes, mod_in_planes, is_input_bn, dilation):
    if dilation > 1:
        # TODO(synk): atrous (dilated) conv branch is never used for ost='32'
        raise NotImplementedError("dilated UNetConv branch not implemented")
    p = {"mod": bool(mod_in_planes), "is_input_bn": bool(is_input_bn)}
    if p["mod"]:
        if p["is_input_bn"]:
            p["bn0"] = init_bn(kg, in_planes)
        p["conv0"] = init_conv(kg, in_planes, out_planes, 1)
        in_planes = out_planes
    p["bn1"] = init_bn(kg, in_planes)
    p["conv1"] = init_conv(kg, in_planes, out_planes, 3)   # stride 2, pad 1
    p["bn2"] = init_bn(kg, out_planes)
    p["conv2"] = init_conv(kg, out_planes, out_planes, 3)  # stride 1, pad 1
    return p


def unet_conv_fwd(p, x):
    if p["mod"]:
        in_bn = p["bn0"] if p["is_input_bn"] else None
        x = conv2d(x, p["conv0"], stride=1, padding=0, in_bn=in_bn)
    x = conv2d(x, p["conv1"], stride=2, padding=1, in_bn=p["bn1"])
    x = conv2d(x, p["conv2"], stride=1, padding=1, in_bn=p["bn2"])
    return x


def init_unet_deconv(kg, in_planes, out_planes, mod_in_planes, max_planes,
                     dilation, output_padding=1):
    if dilation > 1:
        # TODO(synk): atrous deconv branch never used for ost='32'
        raise NotImplementedError("dilated UNetDeConv branch not implemented")
    p = {"mod": bool(mod_in_planes), "output_padding": int(output_padding)}
    p["bn0"] = init_bn(kg, in_planes)
    p["deconv0"] = init_convT(kg, in_planes, out_planes, 3)   # stride 2, pad 1
    p["bn1"] = init_bn(kg, out_planes)
    p["deconv1"] = init_conv(kg, out_planes, out_planes, 3)   # stride 1, pad 1
    if p["mod"]:
        p["bn2"] = init_bn(kg, out_planes)
        p["conv2"] = init_conv(kg, out_planes, max_planes, 1)
    return p


def unet_deconv_fwd(p, x):
    x = conv_transpose2d_s2(x, p["deconv0"],
                            output_padding=p["output_padding"], in_bn=p["bn0"])
    x = conv2d(x, p["deconv1"], stride=1, padding=1, in_bn=p["bn1"])
    if p["mod"]:
        x = conv2d(x, p["conv2"], stride=1, padding=0, in_bn=p["bn2"])
    return x


def init_unet_module(kg, in_planes, nblock, filter_size, in_dim, index,
                     max_planes, atrous=0):
    p = {"down": [], "up": [], "bn": None, "upsample": None}
    cur = float(in_dim)
    if in_planes != max_planes:
        p["bn"] = init_bn(kg, in_planes)
        p["upsample"] = init_conv(kg, in_planes, max_planes, 1)
    for i in range(nblock):
        in_ = in_planes if i == 0 else filter_size
        p["down"].append(init_unet_conv(kg, in_, filter_size,
                                        index and i == 0,
                                        in_planes == max_planes,
                                        (2 ** i) * atrous))
        out_ = filter_size if i == nblock - 1 else 2 * filter_size
        op = 1 - int(cur % 2)
        p["up"].append(init_unet_deconv(kg, out_, filter_size,
                                        index and i == 0, max_planes,
                                        (2 ** i) * atrous, output_padding=op))
        cur = math.ceil(cur / 2)
    return p


def unet_module_fwd(p, x):
    xs = []
    if p["upsample"] is not None:
        x = bn_relu(x, p["bn"])
    xs.append(x)
    for dp in p["down"]:
        xs.append(unet_conv_fwd(dp, xs[-1]))
    out = xs[-1]
    for i in reversed(range(len(p["up"]))):
        out = unet_deconv_fwd(p["up"][i], out)
        x_skip = xs[i]
        if i:
            out = jnp.concatenate([out, x_skip], axis=-1)   # torch.cat(dim=1)
        else:
            if p["upsample"] is not None:
                x_skip = conv2d(x_skip, p["upsample"], stride=1, padding=0)
            out = out + x_skip
    return out


# -----------------------------------------------------------------------------
# Stackedunet_imagenet
# -----------------------------------------------------------------------------

FILTER_FACTORS = [1, 1, 1, 1]
OUTPUT_STRIDE = {"32": 3, "16": 2, "8": 1}


def init_stackedunet(kg, in_dim=224, start_planes=16, filters_base=64,
                     num_classes=1000, depth=1, ost="32"):
    fms = [filters_base * s for s in FILTER_FACTORS]
    if filters_base == 128 and depth == 4:
        output_features = [512, 1024, 1536, 2048]
    elif filters_base == 128 and depth == 7:
        output_features = [512, 1280, 2048, 2304]
    elif filters_base == 64 and depth == 4:
        output_features = [256, 512, 768, 1024]
    else:
        # scaled-down test configuration: same channel ratios as the
        # (filters_base=64, depth=4) row of the original table.
        output_features = [4 * filters_base, 8 * filters_base,
                           12 * filters_base, 16 * filters_base]

    num_planes = start_planes
    feats = [("conv", {"p": init_conv(kg, 3, num_planes, 7),
                       "stride": 2, "padding": 3})]
    in_dim = in_dim // 2
    feats.append(("residual", init_residual(kg, num_planes, 2 * num_planes, stride=2)))
    num_planes *= 2
    in_dim = in_dim // 2

    block_depth = (2, depth, depth, 1)
    nblocks = 2
    for j, d in enumerate(block_depth):
        if j == len(block_depth) - 1:
            nblocks = 1
        for _ in range(d):
            feats.append(("unet", init_unet_module(
                kg, num_planes, nblocks, fms[j], in_dim, 1,
                output_features[j], (j - OUTPUT_STRIDE[ost]) * 2)))
            num_planes = output_features[j]
        if j != len(block_depth) - 1:
            if j > OUTPUT_STRIDE[ost] - 1:
                feats.append(("avgpool", 1))        # AvgPool2d(1,1) == identity
            else:
                feats.append(("avgpool", 2))
                in_dim = in_dim // 2
    feats.append(("bn2", init_bn(kg, num_planes)))
    return {"features": feats, "linear": init_linear(kg, num_planes, num_classes)}


def stackedunet_fwd(params, x_nchw):
    x = jnp.transpose(x_nchw, (0, 2, 3, 1)).astype(ACT_DTYPE)   # NCHW -> NHWC
    bn2 = None
    for kind, p in params["features"]:
        if kind == "conv":
            x = conv2d(x, p["p"], stride=p["stride"], padding=p["padding"])
        elif kind == "residual":
            x = residual_fwd(p, x)
        elif kind == "unet":
            x = unet_module_fwd(p, x)
        elif kind == "avgpool":
            if p == 2:
                x = _avg_pool2x2_impl(x)
            # kernel_size=1, stride=1 pool is identity
        elif kind == "bn2":
            bn2 = p
    lin = params["linear"]
    return _head_impl(x, bn2["gamma"], bn2["beta"], bn2["mean"], bn2["var"],
                      lin["wk"], lin["b"])


# -----------------------------------------------------------------------------
# Main
# -----------------------------------------------------------------------------

if __name__ == "__main__":
    kg = _Keys(seed=0)
    # Small-channel test configuration (channels scaled down, see init_stackedunet).
    # in_dim must be 224 so the final feature map is exactly 7x7 for avg_pool2d(7).
    params = init_stackedunet(kg, in_dim=224, start_planes=8, filters_base=16,
                              num_classes=16, depth=1, ost="32")

    x = jax.random.normal(jax.random.PRNGKey(0), (2, 3, 224, 224), jnp.float32)
    out = stackedunet_fwd(params, x)
    out = jax.block_until_ready(out)

    assert out.shape == (2, 16), out.shape
    assert bool(jnp.all(jnp.isfinite(out)))
    print("KERNEL_OK")
</pallas_src>

<mosaic_0001>
module attributes {stable_mosaic.version = 11 : i64} {
  func.func @_matmul_bias_kernel(%arg0: i32, %arg1: i32, %arg2: i32, %arg3: memref<512x256xbf16, #tpu.memory_space<vmem>>, %arg4: memref<256x128xbf16, #tpu.memory_space<vmem>>, %arg5: memref<1x128xf32, #tpu.memory_space<vmem>>, %arg6: memref<512x128xbf16, #tpu.memory_space<vmem>>, %arg7: memref<512x128xf32, #tpu.memory_space<vmem>>) attributes {dimension_semantics = [#tpu.dimension_semantics<parallel>, #tpu.dimension_semantics<parallel>, #tpu.dimension_semantics<arbitrary>], iteration_bounds = array<i64: 49, 1, 1>, scalar_prefetch = 0 : i64, scratch_operands = 1 : i64, tpu.core_type = #tpu.core_type<tc>, window_params = [{transform_indices = @transform_0, window_bounds = array<i64: 512, 256>}, {transform_indices = @transform_1, window_bounds = array<i64: 256, 128>}, {transform_indices = @transform_2, window_bounds = array<i64: 1, 128>}, {transform_indices = @transform_3, window_bounds = array<i64: 512, 128>}]} {
    %c0_i32 = arith.constant 0 : i32
    %0 = arith.cmpi eq, %arg2, %c0_i32 : i32
    %1 = arith.extui %0 : i1 to i32
    %c0_i32_0 = arith.constant 0 : i32
    %2 = arith.cmpi ne, %1, %c0_i32_0 : i32
    scf.if %2 {
      %cst_10 = arith.constant 0.000000e+00 : f32
      %12 = vector.broadcast %cst_10 : f32 to vector<512x128xf32>
      %c0_11 = arith.constant 0 : index
      %c0_12 = arith.constant 0 : index
      %13 = vector.load %arg7[%c0_11, %c0_12] : memref<512x128xf32, #tpu.memory_space<vmem>>, vector<512x128xf32>
      tpu.vector_store %arg7[%c0_11, %c0_12], %12 {strides = array<i32>} : memref<512x128xf32, #tpu.memory_space<vmem>>, vector<512x128xf32>,
    } else {
    }
    %c0 = arith.constant 0 : index
    %c0_1 = arith.constant 0 : index
    %3 = vector.load %arg7[%c0, %c0_1] : memref<512x128xf32, #tpu.memory_space<vmem>>, vector<512x128xf32>
    %c0_2 = arith.constant 0 : index
    %c0_3 = arith.constant 0 : index
    %4 = vector.load %arg3[%c0_2, %c0_3] : memref<512x256xbf16, #tpu.memory_space<vmem>>, vector<512x256xbf16>
    %c0_4 = arith.constant 0 : index
    %c0_5 = arith.constant 0 : index
    %5 = vector.load %arg4[%c0_4, %c0_5] : memref<256x128xbf16, #tpu.memory_space<vmem>>, vector<256x128xbf16>
    %cst = arith.constant dense<0.000000e+00> : vector<512x128xf32>
    %6 = tpu.matmul %4, %5, %cst {dimension_numbers = #tpu.dot_dimension_numbers<[1], [0], [0], [1], [0, 0, 1, 1], [], []>} : vector<512x256xbf16>, vector<256x128xbf16>, vector<512x128xf32> -> vector<512x128xf32>
    %7 = arith.addf %3, %6 : vector<512x128xf32>
    %c0_6 = arith.constant 0 : index
    %c0_7 = arith.constant 0 : index
    %8 = vector.load %arg7[%c0_6, %c0_7] : memref<512x128xf32, #tpu.memory_space<vmem>>, vector<512x128xf32>
    tpu.vector_store %arg7[%c0_6, %c0_7], %7 {strides = array<i32>} : memref<512x128xf32, #tpu.memory_space<vmem>>, vector<512x128xf32>,
    %c0_i32_8 = arith.constant 0 : i32
    %9 = arith.cmpi eq, %arg2, %c0_i32_8 : i32
    %10 = arith.extui %9 : i1 to i32
    %c0_i32_9 = arith.constant 0 : i32
    %11 = arith.cmpi ne, %10, %c0_i32_9 : i32
    scf.if %11 {
      %c0_10 = arith.constant 0 : index
      %c0_11 = arith.constant 0 : index
      %12 = vector.load %arg7[%c0_10, %c0_11] : memref<512x128xf32, #tpu.memory_space<vmem>>, vector<512x128xf32>
      %c0_12 = arith.constant 0 : index
      %c0_13 = arith.constant 0 : index
      %13 = vector.load %arg5[%c0_12, %c0_13] : memref<1x128xf32, #tpu.memory_space<vmem>>, vector<1x128xf32>
      %14 = vector.broadcast %13 : vector<1x128xf32> to vector<512x128xf32>
      %15 = arith.addf %12, %14 : vector<512x128xf32>
      %16 = arith.truncf %15 : vector<512x128xf32> to vector<512x128xbf16>
      %c0_14 = arith.constant 0 : index
      %c0_15 = arith.constant 0 : index
      %17 = vector.load %arg6[%c0_14, %c0_15] : memref<512x128xbf16, #tpu.memory_space<vmem>>, vector<512x128xbf16>
      tpu.vector_store %arg6[%c0_14, %c0_15], %16 {strides = array<i32>} : memref<512x128xbf16, #tpu.memory_space<vmem>>, vector<512x128xbf16>,
    } else {
    }
    return
  }
  func.func @transform_0(%arg0: i32, %arg1: i32, %arg2: i32) -> (i32, i32) {
    %c0_i32 = arith.constant 0 : i32
    return %arg0, %arg2 : i32, i32
  }
  func.func @transform_1(%arg0: i32, %arg1: i32, %arg2: i32) -> (i32, i32) {
    %c0_i32 = arith.constant 0 : i32
    return %arg2, %arg1 : i32, i32
  }
  func.func @transform_2(%arg0: i32, %arg1: i32, %arg2: i32) -> (i32, i32) {
    %c0_i32 = arith.constant 0 : i32
    %c0_i32_0 = arith.constant 0 : i32
    return %c0_i32, %arg1 : i32, i32
  }
  func.func @transform_3(%arg0: i32, %arg1: i32, %arg2: i32) -> (i32, i32) {
    %c0_i32 = arith.constant 0 : i32
    return %arg0, %arg1 : i32, i32
  }
}

</mosaic_0001>

<llo_original>
// kernel: _conv2d_impl.1
$region0: #{_conv2d_impl.1}
  #allocation0 [shape = 'u32[]', space=smem, size = 0x4, offset = 0x4, fixed_abs, tag = 'smem constant byte address 0x4 - core index']
  #allocation1 [shape = 'u32[144,128]{1,0:T(1,128)}', space=vmem, size = 0x12000, scoped, tag = 'internal scratch']
  #allocation2 [shape = 'f32[512,128]{1,0:T(8,128)}', space=vmem, size = 0x40000, scoped, tag = 'scratch operand']
  %s0 = inlined_call_operand.vmem [shape: bf16[25088,256], index: 0, kind: input, shape index: {}]
  %s1 = inlined_call_operand.vmem [shape: bf16[256,128], index: 1, kind: input, shape index: {}]
  %s2 = inlined_call_operand.vmem [shape: f32[1,128], index: 2, kind: input, shape index: {}]
  %s3 = inlined_call_operand.vmem [shape: bf16[25088,128], index: 3, kind: output, shape index: {}]
  %s4 = sld [smem:[#allocation0]]
  $region53: #{_conv2d_impl.1} parent=0
    _
  %s6 = ssub.s32 1, %s4
  %s7 = scalar_select 0, %s6, %s4
  loop: start=0, step=1, limit=51
  $region2: #{_conv2d_impl.1} parent=0 // loop_pre_header
    _
  $region3: #{_conv2d_impl.1} parent=0 // loop_header
    %s9 = sphi 0, %s13
    %p10 = scmp.ge.s32.totalorder %s9, 51
    %s16 = sphi 0, %s35
    %s17 = sphi 0, %s31
    %s18 = sphi 0, %s27
    %s19 = sphi 0, %s16
    %s20 = sphi 0, %s17
    %s21 = sphi 0, %s18
    %s22 = sphi 0, %s19
    %s23 = sphi 0, %s20
    %s24 = sphi 0, %s21
    %s40 = sphi 0, %s42
    %s43 = sphi 0, %s40
    %s44 = sphi 0, %s43
    %s60 = sphi 0, %s44
    %s68 = sphi 0, %s70
    %s71 = sphi 0, %s68
    %s72 = sphi 0, %s71
    %s88 = sphi 0, %s72
    %s94 = sphi 0, %s96
    %s97 = sphi 0, %s94
    %s98 = sphi 0, %s97
    %s114 = sphi 0, %s98
    %s122 = sphi 0, %s124
    %s125 = sphi 0, %s122
    %s126 = sphi 0, %s125
    %s142 = sphi 0, %s126
  $region4: #{_conv2d_impl.1} parent=0 // loop_header_branch
    %12 = sbr.rel (%p10) target = $region8
  $region5: #{_conv2d_impl.1} parent=0 // loop_body
    %s14 = ssub.s32 %s9, 1
    %s15 = ssub.s32 %s9, 2
    %s25 = sadd.s32 1, %s18
    %p26 = scmp.ge.s32.totalorder %s25, 1
    %s27 = scalar_select %p26, 0, %s25
    %s28 = sadd.s32 1, %s17
    %s29 = scalar_select %p26, %s28, %s17
    %p30 = scmp.ge.s32.totalorder %s29, 1
    %s31 = scalar_select %p30, 0, %s29
    %s32 = sadd.s32 1, %s16
    %s33 = scalar_select %p30, %s32, %s16
    %p34 = scmp.ge.s32.totalorder %s33, 49
    %s35 = scalar_select %p34, 0, %s33
    %s36 = ssub.s32 %s16, %s35
    %s37 = ssub.s32 %s18, %s27
    %s38 = sor.u32 %s36, %s37
    %p39 = scmp.eq.s32.totalorder %s38, 0
    %s41 = sadd.s32 %s40, 1
    %s42 = scalar_select %p39, %s40, %s41
    %p45 = pneg %p39
    %p46 = scmp.eq.s32.totalorder %s9, 48
    %p47 = por %p45, %p46
    %p48 = scmp.ne.s32.totalorder %s40, %s43
    %p49 = scmp.eq.s32.totalorder %s9, 0
    %p50 = por %p48, %p49
    %p51 = scmp.ne.s32.totalorder %s40, %s43
    %p52 = scmp.eq.s32.totalorder %s14, 48
    %p53 = por %p51, %p52
    %p54 = scmp.ne.s32.totalorder %s43, %s44
    %p55 = scmp.eq.s32.totalorder %s14, 0
    %p56 = por %p54, %p55
    %p57 = scmp.ne.s32.totalorder %s43, %s44
    %p58 = scmp.eq.s32.totalorder %s15, 48
    %p59 = por %p57, %p58
    %p61 = scmp.ne.s32.totalorder %s44, %s60
    %p62 = scmp.eq.s32.totalorder %s15, 0
    %p63 = por %p61, %p62
    %s64 = ssub.s32 %s18, %s27
    %s65 = ssub.s32 %s17, %s31
    %s66 = sor.u32 %s64, %s65
    %p67 = scmp.eq.s32.totalorder %s66, 0
    %s69 = sadd.s32 %s68, 1
    %s70 = scalar_select %p67, %s68, %s69
    %p73 = pneg %p67
    %p74 = scmp.eq.s32.totalorder %s9, 48
    %p75 = por %p73, %p74
    %p76 = scmp.ne.s32.totalorder %s68, %s71
    %p77 = scmp.eq.s32.totalorder %s9, 0
    %p78 = por %p76, %p77
    %p79 = scmp.ne.s32.totalorder %s68, %s71
    %p80 = scmp.eq.s32.totalorder %s14, 48
    %p81 = por %p79, %p80
    %p82 = scmp.ne.s32.totalorder %s71, %s72
    %p83 = scmp.eq.s32.totalorder %s14, 0
    %p84 = por %p82, %p83
    %p85 = scmp.ne.s32.totalorder %s71, %s72
    %p86 = scmp.eq.s32.totalorder %s15, 48
    %p87 = por %p85, %p86
    %p89 = scmp.ne.s32.totalorder %s72, %s88
    %p90 = scmp.eq.s32.totalorder %s15, 0
    %p91 = por %p89, %p90
    %s92 = ssub.s32 %s17, %s31
    %p93 = scmp.eq.s32.totalorder %s92, 0
    %s95 = sadd.s32 %s94, 1
    %s96 = scalar_select %p93, %s94, %s95
    %p99 = pneg %p93
    %p100 = scmp.eq.s32.totalorder %s9, 48
    %p101 = por %p99, %p100
    %p102 = scmp.ne.s32.totalorder %s94, %s97
    %p103 = scmp.eq.s32.totalorder %s9, 0
    %p104 = por %p102, %p103
    %p105 = scmp.ne.s32.totalorder %s94, %s97
    %p106 = scmp.eq.s32.totalorder %s14, 48
    %p107 = por %p105, %p106
    %p108 = scmp.ne.s32.totalorder %s97, %s98
    %p109 = scmp.eq.s32.totalorder %s14, 0
    %p110 = por %p108, %p109
    %p111 = scmp.ne.s32.totalorder %s97, %s98
    %p112 = scmp.eq.s32.totalorder %s15, 48
    %p113 = por %p111, %p112
    %p115 = scmp.ne.s32.totalorder %s98, %s114
    %p116 = scmp.eq.s32.totalorder %s15, 0
    %p117 = por %p115, %p116
    %s118 = ssub.s32 %s16, %s35
    %s119 = ssub.s32 %s17, %s31
    %s120 = sor.u32 %s118, %s119
    %p121 = scmp.eq.s32.totalorder %s120, 0
    %s123 = sadd.s32 %s122, 1
    %s124 = scalar_select %p121, %s122, %s123
    %p127 = pneg %p121
    %p128 = scmp.eq.s32.totalorder %s9, 48
    %p129 = por %p127, %p128
    %p130 = scmp.ne.s32.totalorder %s122, %s125
    %p131 = scmp.eq.s32.totalorder %s9, 0
    %p132 = por %p130, %p131
    %p133 = scmp.ne.s32.totalorder %s122, %s125
    %p134 = scmp.eq.s32.totalorder %s14, 48
    %p135 = por %p133, %p134
    %p136 = scmp.ne.s32.totalorder %s125, %s126
    %p137 = scmp.eq.s32.totalorder %s14, 0
    %p138 = por %p136, %p137
    %p139 = scmp.ne.s32.totalorder %s125, %s126
    %p140 = scmp.eq.s32.totalorder %s15, 48
    %p141 = por %p139, %p140
    %p143 = scmp.ne.s32.totalorder %s126, %s142
    %p144 = scmp.eq.s32.totalorder %s15, 0
    %p145 = por %p143, %p144
    %p146 = scmp.le.s32.totalorder 1, %s9
    %p147 = scmp.lt.s32.totalorder %s9, 50
    %p148 = pnand %p146, %p147
    %p149 = pneg %p148
    // Predicated region
    $region9: #{_conv2d_impl.1} parent=5 // pred_check
      _
    $region10: #{_conv2d_impl.1} parent=5 // pred_check_branch
      %151 = sbr.rel (%p148) target = $region12
    $region11: #{_conv2d_impl.1} parent=5 // pred_region
      %s152 = ssub.s32 %s9, 1
      // Predicated region
      $region13: #{_conv2d_impl.1} parent=11 // pred_check
        %p153 = pneg %p84
      $region14: #{_conv2d_impl.1} parent=11 // pred_check_branch
        %155 = sbr.rel (%p153) target = $region16
      $region15: #{_conv2d_impl.1} parent=11 // pred_region
        %s156 = smul.u32 32, %s21
        %p157 = scmp.lt.s32.totalorder %s156, 31
        %s158 = scalar_select %p157, %s156, 31
        %p159 = scmp.lt.s32.totalorder %s20, 0
        %s160 = scalar_select %p159, %s20, 0
        %s161 = sadd.s32 %s160, %s158
        %s162 = smul.addr %s161, 4
        %s163 = scalar_lea.vmem %s1, %s162
        %s164 = smul.u32 32, %s21
      $region16: #{_conv2d_impl.1} parent=11 // pred_fallthru
        _
      // Predicated region
      $region17: #{_conv2d_impl.1} parent=11 // pred_check
        %p165 = pneg %p110
      $region18: #{_conv2d_impl.1} parent=11 // pred_check_branch
        %167 = sbr.rel (%p165) target = $region20
      $region19: #{_conv2d_impl.1} parent=11 // pred_region
        %p168 = scmp.lt.s32.totalorder %s20, 0
        %s169 = scalar_select %p168, %s20, 0
        %s170 = scalar_lea.vmem %s2, %s169
      $region20: #{_conv2d_impl.1} parent=11 // pred_fallthru
        _
    $region12: #{_conv2d_impl.1} parent=5 // pred_fallthru
      _
    %p171 = scmp.lt.s32.totalorder %s9, 49
    // Predicated region
    $region21: #{_conv2d_impl.1} parent=5 // pred_check
      %p172 = pneg %p171
    $region22: #{_conv2d_impl.1} parent=5 // pred_check_branch
      %174 = sbr.rel (%p172) target = $region24
    $region23: #{_conv2d_impl.1} parent=5 // pred_region
      // Predicated region
      $region25: #{_conv2d_impl.1} parent=23 // pred_check
        %p175 = pneg %p50
      $region26: #{_conv2d_impl.1} parent=23 // pred_check_branch
        %177 = sbr.rel (%p175) target = $region28
      $region27: #{_conv2d_impl.1} parent=23 // pred_region
        %s178 = smul.u32 64, %s16
        %s179 = smul.u32 2, %s18
        %p180 = scmp.lt.s32.totalorder %s178, 3135
        %s181 = scalar_select %p180, %s178, 3135
        %p182 = scmp.lt.s32.totalorder %s179, 1
        %s183 = scalar_select %p182, %s179, 1
        %s184 = smul.addr %s181, 2
        %s185 = sadd.s32 %s183, %s184
        %s186 = smul.addr %s185, 4
        %s187 = scalar_lea.vmem %s0, %s186
        %s188 = smul.u32 64, %s16
        %s189 = smul.u32 2, %s18
      $region28: #{_conv2d_impl.1} parent=23 // pred_fallthru
        _
    $region24: #{_conv2d_impl.1} parent=5 // pred_fallthru
      _
    %p190 = scmp.le.s32.totalorder 1, %s9
    %p191 = scmp.lt.s32.totalorder %s9, 50
    %p192 = pnand %p190, %p191
    %p193 = pneg %p192
    // Predicated region
    $region29: #{_conv2d_impl.1} parent=5 // pred_check
      _
    $region30: #{_conv2d_impl.1} parent=5 // pred_check_branch
      %195 = sbr.rel (%p192) target = $region32
    $region31: #{_conv2d_impl.1} parent=5 // pred_region
      %s196 = ssub.s32 %s9, 1
      %s197 = smul.u32 64, %s19
      %s198 = smul.u32 2, %s21
      %p199 = scmp.lt.s32.totalorder %s197, 3135
      %s200 = scalar_select %p199, %s197, 3135
      %p201 = scmp.lt.s32.totalorder %s198, 1
      %s202 = scalar_select %p201, %s198, 1
      %s203 = smul.addr %s200, 2
      %s204 = sadd.s32 %s202, %s203
      %s205 = smul.addr %s204, 4
      %s206 = scalar_lea.vmem %s0, %s205
      %p207 = pneg %p56
      %p208 = pneg %p53
      %s209 = smul.u32 32, %s21
      %p210 = scmp.lt.s32.totalorder %s209, 31
      %s211 = scalar_select %p210, %s209, 31
      %p212 = scmp.lt.s32.totalorder %s20, 0
      %s213 = scalar_select %p212, %s20, 0
      %s214 = sadd.s32 %s213, %s211
      %s215 = smul.addr %s214, 4
      %s216 = scalar_lea.vmem %s1, %s215
      %p217 = pneg %p84
      %p218 = pneg %p81
      %p219 = scmp.lt.s32.totalorder %s20, 0
      %s220 = scalar_select %p219, %s20, 0
      %s221 = scalar_lea.vmem %s2, %s220
      %p222 = pneg %p110
      %p223 = pneg %p107
      %p224 = pneg %p138
      %p225 = pneg %p135
      %s226 = smul.u32 64, %s19
      %p227 = scmp.lt.s32.totalorder %s226, 3135
      %s228 = scalar_select %p227, %s226, 3135
      %p229 = scmp.lt.s32.totalorder %s20, 0
      %s230 = scalar_select %p229, %s20, 0
      %s231 = sadd.s32 %s230, %s228
      %s232 = smul.addr %s231, 4
      %s233 = scalar_lea.vmem %s3, %s232
      %s234 = smul.u32 64, %s19
      %s235 = smul.u32 2, %s21
      %p236 = scmp.lt.s32.totalorder %s234, 3135
      %s237 = scalar_select %p236, %s234, 3135
      %p238 = scmp.lt.s32.totalorder %s235, 1
      %s239 = scalar_select %p238, %s235, 1
      %s240 = smul.addr %s237, 2
      %s241 = sadd.s32 %s239, %s240
      %s242 = smul.addr %s241, 4
      %s243 = scalar_lea.vmem %s0, %s242
      %s244 = smul.u32 64, %s19
      %s245 = smul.u32 2, %s21
      %s246 = smul.u32 32, %s21
      %p247 = scmp.lt.s32.totalorder %s246, 31
      %s248 = scalar_select %p247, %s246, 31
      %p249 = scmp.lt.s32.totalorder %s20, 0
      %s250 = scalar_select %p249, %s20, 0
      %s251 = sadd.s32 %s250, %s248
      %s252 = smul.addr %s251, 4
      %s253 = scalar_lea.vmem %s1, %s252
      %s254 = smul.u32 32, %s21
      %p255 = scmp.lt.s32.totalorder %s20, 0
      %s256 = scalar_select %p255, %s20, 0
      %s257 = scalar_lea.vmem %s2, %s256
      %s258 = smul.u32 64, %s19
      %p259 = scmp.lt.s32.totalorder %s258, 3135
      %s260 = scalar_select %p259, %s258, 3135
      %p261 = scmp.lt.s32.totalorder %s20, 0
      %s262 = scalar_select %p261, %s20, 0
      %s263 = sadd.s32 %s262, %s260
      %s264 = smul.addr %s263, 4
      %s265 = scalar_lea.vmem %s3, %s264
      %s266 = smul.u32 64, %s19
      %p268 = scmp.eq.s32.totalorder %s21, 0
      // Predicated region
      $region33: #{_conv2d_impl.1} parent=31 // pred_check
        %p269 = pneg %p268
      $region34: #{_conv2d_impl.1} parent=31 // pred_check_branch
        %271 = sbr.rel (%p269) target = $region36
      $region35: #{_conv2d_impl.1} parent=31 // pred_region
        %272 = vst [vmem:[#allocation2] sm:$0xff] 0.0
        %273 = vst [vmem:[#allocation2 + $0x8] sm:$0xff] 0.0
        %274 = vst [vmem:[#allocation2 + $0x10] sm:$0xff] 0.0
        %275 = vst [vmem:[#allocation2 + $0x18] sm:$0xff] 0.0
        %276 = vst [vmem:[#allocation2 + $0x20] sm:$0xff] 0.0
        %277 = vst [vmem:[#allocation2 + $0x28] sm:$0xff] 0.0
        %278 = vst [vmem:[#allocation2 + $0x30] sm:$0xff] 0.0
        %279 = vst [vmem:[#allocation2 + $0x38] sm:$0xff] 0.0
        %280 = vst [vmem:[#allocation2 + $0x40] sm:$0xff] 0.0
        %281 = vst [vmem:[#allocation2 + $0x48] sm:$0xff] 0.0
        %282 = vst [vmem:[#allocation2 + $0x50] sm:$0xff] 0.0
        %283 = vst [vmem:[#allocation2 + $0x58] sm:$0xff] 0.0
        %284 = vst [vmem:[#allocation2 + $0x60] sm:$0xff] 0.0
        %285 = vst [vmem:[#allocation2 + $0x68] sm:$0xff] 0.0
        %286 = vst [vmem:[#allocation2 + $0x70] sm:$0xff] 0.0
        %287 = vst [vmem:[#allocation2 + $0x78] sm:$0xff] 0.0
        %288 = vst [vmem:[#allocation2 + $0x80] sm:$0xff] 0.0
        %289 = vst [vmem:[#allocation2 + $0x88] sm:$0xff] 0.0
        %290 = vst [vmem:[#allocation2 + $0x90] sm:$0xff] 0.0
        %291 = vst [vmem:[#allocation2 + $0x98] sm:$0xff] 0.0
        %292 = vst [vmem:[#allocation2 + $0xa0] sm:$0xff] 0.0
        %293 = vst [vmem:[#allocation2 + $0xa8] sm:$0xff] 0.0
        %294 = vst [vmem:[#allocation2 + $0xb0] sm:$0xff] 0.0
        %295 = vst [vmem:[#allocation2 + $0xb8] sm:$0xff] 0.0
        %296 = vst [vmem:[#allocation2 + $0xc0] sm:$0xff] 0.0
        %297 = vst [vmem:[#allocation2 + $0xc8] sm:$0xff] 0.0
        %298 = vst [vmem:[#allocation2 + $0xd0] sm:$0xff] 0.0
        %299 = vst [vmem:[#allocation2 + $0xd8] sm:$0xff] 0.0
        %300 = vst [vmem:[#allocation2 + $0xe0] sm:$0xff] 0.0
        %301 = vst [vmem:[#allocation2 + $0xe8] sm:$0xff] 0.0
        %302 = vst [vmem:[#allocation2 + $0xf0] sm:$0xff] 0.0
        %303 = vst [vmem:[#allocation2 + $0xf8] sm:$0xff] 0.0
        %304 = vst [vmem:[#allocation2 + $0x100] sm:$0xff] 0.0
        %305 = vst [vmem:[#allocation2 + $0x108] sm:$0xff] 0.0
        %306 = vst [vmem:[#allocation2 + $0x110] sm:$0xff] 0.0
        %307 = vst [vmem:[#allocation2 + $0x118] sm:$0xff] 0.0
        %308 = vst [vmem:[#allocation2 + $0x120] sm:$0xff] 0.0
        %309 = vst [vmem:[#allocation2 + $0x128] sm:$0xff] 0.0
        %310 = vst [vmem:[#allocation2 + $0x130] sm:$0xff] 0.0
        %311 = vst [vmem:[#allocation2 + $0x138] sm:$0xff] 0.0
        %312 = vst [vmem:[#allocation2 + $0x140] sm:$0xff] 0.0
        %313 = vst [vmem:[#allocation2 + $0x148] sm:$0xff] 0.0
        %314 = vst [vmem:[#allocation2 + $0x150] sm:$0xff] 0.0
        %315 = vst [vmem:[#allocation2 + $0x158] sm:$0xff] 0.0
        %316 = vst [vmem:[#allocation2 + $0x160] sm:$0xff] 0.0
        %317 = vst [vmem:[#allocation2 + $0x168] sm:$0xff] 0.0
        %318 = vst [vmem:[#allocation2 + $0x170] sm:$0xff] 0.0
        %319 = vst [vmem:[#allocation2 + $0x178] sm:$0xff] 0.0
        %320 = vst [vmem:[#allocation2 + $0x180] sm:$0xff] 0.0
        %321 = vst [vmem:[#allocation2 + $0x188] sm:$0xff] 0.0
        %322 = vst [vmem:[#allocation2 + $0x190] sm:$0xff] 0.0
        %323 = vst [vmem:[#allocation2 + $0x198] sm:$0xff] 0.0
        %324 = vst [vmem:[#allocation2 + $0x1a0] sm:$0xff] 0.0
        %325 = vst [vmem:[#allocation2 + $0x1a8] sm:$0xff] 0.0
        %326 = vst [vmem:[#allocation2 + $0x1b0] sm:$0xff] 0.0
        %327 = vst [vmem:[#allocation2 + $0x1b8] sm:$0xff] 0.0
        %328 = vst [vmem:[#allocation2 + $0x1c0] sm:$0xff] 0.0
        %329 = vst [vmem:[#allocation2 + $0x1c8] sm:$0xff] 0.0
        %330 = vst [vmem:[#allocation2 + $0x1d0] sm:$0xff] 0.0
        %331 = vst [vmem:[#allocation2 + $0x1d8] sm:$0xff] 0.0
        %332 = vst [vmem:[#allocation2 + $0x1e0] sm:$0xff] 0.0
        %333 = vst [vmem:[#allocation2 + $0x1e8] sm:$0xff] 0.0
        %334 = vst [vmem:[#allocation2 + $0x1f0] sm:$0xff] 0.0
        %335 = vst [vmem:[#allocation2 + $0x1f8] sm:$0xff] 0.0
      $region36: #{_conv2d_impl.1} parent=31 // pred_fallthru
        _
      %v336 = vld [vmem:[#allocation2] sm:$0xff]
      %v337 = vld [vmem:[#allocation2 + $0x8] sm:$0xff]
      %v338 = vld [vmem:[#allocation2 + $0x10] sm:$0xff]
      %v339 = vld [vmem:[#allocation2 + $0x18] sm:$0xff]
      %v340 = vld [vmem:[#allocation2 + $0x20] sm:$0xff]
      %v341 = vld [vmem:[#allocation2 + $0x28] sm:$0xff]
      %v342 = vld [vmem:[#allocation2 + $0x30] sm:$0xff]
      %v343 = vld [vmem:[#allocation2 + $0x38] sm:$0xff]
      %v344 = vld [vmem:[#allocation2 + $0x40] sm:$0xff]
      %v345 = vld [vmem:[#allocation2 + $0x48] sm:$0xff]
      %v346 = vld [vmem:[#allocation2 + $0x50] sm:$0xff]
      %v347 = vld [vmem:[#allocation2 + $0x58] sm:$0xff]
      %v348 = vld [vmem:[#allocation2 + $0x60] sm:$0xff]
      %v349 = vld [vmem:[#allocation2 + $0x68] sm:$0xff]
      %v350 = vld [vmem:[#allocation2 + $0x70] sm:$0xff]
      %v351 = vld [vmem:[#allocation2 + $0x78] sm:$0xff]
      %v352 = vld [vmem:[#allocation2 + $0x80] sm:$0xff]
      %v353 = vld [vmem:[#allocation2 + $0x88] sm:$0xff]
      %v354 = vld [vmem:[#allocation2 + $0x90] sm:$0xff]
      %v355 = vld [vmem:[#allocation2 + $0x98] sm:$0xff]
      %v356 = vld [vmem:[#allocation2 + $0xa0] sm:$0xff]
      %v357 = vld [vmem:[#allocation2 + $0xa8] sm:$0xff]
      %v358 = vld [vmem:[#allocation2 + $0xb0] sm:$0xff]
      %v359 = vld [vmem:[#allocation2 + $0xb8] sm:$0xff]
      %v360 = vld [vmem:[#allocation2 + $0xc0] sm:$0xff]
      %v361 = vld [vmem:[#allocation2 + $0xc8] sm:$0xff]
      %v362 = vld [vmem:[#allocation2 + $0xd0] sm:$0xff]
      %v363 = vld [vmem:[#allocation2 + $0xd8] sm:$0xff]
      %v364 = vld [vmem:[#allocation2 + $0xe0] sm:$0xff]
      %v365 = vld [vmem:[#allocation2 + $0xe8] sm:$0xff]
      %v366 = vld [vmem:[#allocation2 + $0xf0] sm:$0xff]
      %v367 = vld [vmem:[#allocation2 + $0xf8] sm:$0xff]
      %v368 = vld [vmem:[#allocation2 + $0x100] sm:$0xff]
      %v369 = vld [vmem:[#allocation2 + $0x108] sm:$0xff]
      %v370 = vld [vmem:[#allocation2 + $0x110] sm:$0xff]
      %v371 = vld [vmem:[#allocation2 + $0x118] sm:$0xff]
      %v372 = vld [vmem:[#allocation2 + $0x120] sm:$0xff]
      %v373 = vld [vmem:[#allocation2 + $0x128] sm:$0xff]
      %v374 = vld [vmem:[#allocation2 + $0x130] sm:$0xff]
      %v375 = vld [vmem:[#allocation2 + $0x138] sm:$0xff]
      %v376 = vld [vmem:[#allocation2 + $0x140] sm:$0xff]
      %v377 = vld [vmem:[#allocation2 + $0x148] sm:$0xff]
      %v378 = vld [vmem:[#allocation2 + $0x150] sm:$0xff]
      %v379 = vld [vmem:[#allocation2 + $0x158] sm:$0xff]
      %v380 = vld [vmem:[#allocation2 + $0x160] sm:$0xff]
      %v381 = vld [vmem:[#allocation2 + $0x168] sm:$0xff]
      %v382 = vld [vmem:[#allocation2 + $0x170] sm:$0xff]
      %v383 = vld [vmem:[#allocation2 + $0x178] sm:$0xff]
      %v384 = vld [vmem:[#allocation2 + $0x180] sm:$0xff]
      %v385 = vld [vmem:[#allocation2 + $0x188] sm:$0xff]
      %v386 = vld [vmem:[#allocation2 + $0x190] sm:$0xff]
      %v387 = vld [vmem:[#allocation2 + $0x198] sm:$0xff]
      %v388 = vld [vmem:[#allocation2 + $0x1a0] sm:$0xff]
      %v389 = vld [vmem:[#allocation2 + $0x1a8] sm:$0xff]
      %v390 = vld [vmem:[#allocation2 + $0x1b0] sm:$0xff]
      %v391 = vld [vmem:[#allocation2 + $0x1b8] sm:$0xff]
      %v392 = vld [vmem:[#allocation2 + $0x1c0] sm:$0xff]
      %v393 = vld [vmem:[#allocation2 + $0x1c8] sm:$0xff]
      %v394 = vld [vmem:[#allocation2 + $0x1d0] sm:$0xff]
      %v395 = vld [vmem:[#allocation2 + $0x1d8] sm:$0xff]
      %v396 = vld [vmem:[#allocation2 + $0x1e0] sm:$0xff]
      %v397 = vld [vmem:[#allocation2 + $0x1e8] sm:$0xff]
      %v398 = vld [vmem:[#allocation2 + $0x1f0] sm:$0xff]
      %v399 = vld [vmem:[#allocation2 + $0x1f8] sm:$0xff]
      %v400 = vld [vmem:[%s243] sm:$0xff]
      %v401 = vld [vmem:[%s243 + $0x8] sm:$0xff]
      %v402 = vld [vmem:[%s243 + $0x10] sm:$0xff]
      %v403 = vld [vmem:[%s243 + $0x18] sm:$0xff]
      %v404 = vld [vmem:[%s243 + $0x20] sm:$0xff]
      %v405 = vld [vmem:[%s243 + $0x28] sm:$0xff]
      %v406 = vld [vmem:[%s243 + $0x30] sm:$0xff]
      %v407 = vld [vmem:[%s243 + $0x38] sm:$0xff]
      %v408 = vld [vmem:[%s243 + $0x40] sm:$0xff]
      %v409 = vld [vmem:[%s243 + $0x48] sm:$0xff]
      %v410 = vld [vmem:[%s243 + $0x50] sm:$0xff]
      %v411 = vld [vmem:[%s243 + $0x58] sm:$0xff]
      %v412 = vld [vmem:[%s243 + $0x60] sm:$0xff]
      %v413 = vld [vmem:[%s243 + $0x68] sm:$0xff]
      %v414 = vld [vmem:[%s243 + $0x70] sm:$0xff]
      %v415 = vld [vmem:[%s243 + $0x78] sm:$0xff]
      %v416 = vld [vmem:[%s243 + $0x80] sm:$0xff]
      %v417 = vld [vmem:[%s243 + $0x88] sm:$0xff]
      %v418 = vld [vmem:[%s243 + $0x90] sm:$0xff]
      %v419 = vld [vmem:[%s243 + $0x98] sm:$0xff]
      %v420 = vld [vmem:[%s243 + $0xa0] sm:$0xff]
      %v421 = vld [vmem:[%s243 + $0xa8] sm:$0xff]
      %v422 = vld [vmem:[%s243 + $0xb0] sm:$0xff]
      %v423 = vld [vmem:[%s243 + $0xb8] sm:$0xff]
      %v424 = vld [vmem:[%s243 + $0xc0] sm:$0xff]
      %v425 = vld [vmem:[%s243 + $0xc8] sm:$0xff]
      %v426 = vld [vmem:[%s243 + $0xd0] sm:$0xff]
      %v427 = vld [vmem:[%s243 + $0xd8] sm:$0xff]
      %v428 = vld [vmem:[%s243 + $0xe0] sm:$0xff]
      %v429 = vld [vmem:[%s243 + $0xe8] sm:$0xff]
      %v430 = vld [vmem:[%s243 + $0xf0] sm:$0xff]
      %v431 = vld [vmem:[%s243 + $0xf8] sm:$0xff]
      %v432 = vld [vmem:[%s243 + $0x100] sm:$0xff]
      %v433 = vld [vmem:[%s243 + $0x108] sm:$0xff]
      %v434 = vld [vmem:[%s243 + $0x110] sm:$0xff]
      %v435 = vld [vmem:[%s243 + $0x118] sm:$0xff]
      %v436 = vld [vmem:[%s243 + $0x120] sm:$0xff]
      %v437 = vld [vmem:[%s243 + $0x128] sm:$0xff]
      %v438 = vld [vmem:[%s243 + $0x130] sm:$0xff]
      %v439 = vld [vmem:[%s243 + $0x138] sm:$0xff]
      %v440 = vld [vmem:[%s243 + $0x140] sm:$0xff]
      %v441 = vld [vmem:[%s243 + $0x148] sm:$0xff]
      %v442 = vld [vmem:[%s243 + $0x150] sm:$0xff]
      %v443 = vld [vmem:[%s243 + $0x158] sm:$0xff]
      %v444 = vld [vmem:[%s243 + $0x160] sm:$0xff]
      %v445 = vld [vmem:[%s243 + $0x168] sm:$0xff]
      %v446 = vld [vmem:[%s243 + $0x170] sm:$0xff]
      %v447 = vld [vmem:[%s243 + $0x178] sm:$0xff]
      %v448 = vld [vmem:[%s243 + $0x180] sm:$0xff]
      %v449 = vld [vmem:[%s243 + $0x188] sm:$0xff]
      %v450 = vld [vmem:[%s243 + $0x190] sm:$0xff]
      %v451 = vld [vmem:[%s243 + $0x198] sm:$0xff]
      %v452 = vld [vmem:[%s243 + $0x1a0] sm:$0xff]
      %v453 = vld [vmem:[%s243 + $0x1a8] sm:$0xff]
      %v454 = vld [vmem:[%s243 + $0x1b0] sm:$0xff]
      %v455 = vld [vmem:[%s243 + $0x1b8] sm:$0xff]
      %v456 = vld [vmem:[%s243 + $0x1c0] sm:$0xff]
      %v457 = vld [vmem:[%s243 + $0x1c8] sm:$0xff]
      %v458 = vld [vmem:[%s243 + $0x1d0] sm:$0xff]
      %v459 = vld [vmem:[%s243 + $0x1d8] sm:$0xff]
      %v460 = vld [vmem:[%s243 + $0x1e0] sm:$0xff]
      %v461 = vld [vmem:[%s243 + $0x1e8] sm:$0xff]
      %v462 = vld [vmem:[%s243 + $0x1f0] sm:$0xff]
      %v463 = vld [vmem:[%s243 + $0x1f8] sm:$0xff]
      %v464 = vld [vmem:[%s253] sm:$0xf]
      %v465 = vld [vmem:[%s253 + $0x4] sm:$0xf]
      %v466 = vld [vmem:[%s253 + $0x8] sm:$0xf]
      %v467 = vld [vmem:[%s253 + $0xc] sm:$0xf]
      %v468 = vld [vmem:[%s253 + $0x10] sm:$0xf]
      %v469 = vld [vmem:[%s253 + $0x14] sm:$0xf]
      %v470 = vld [vmem:[%s253 + $0x18] sm:$0xf]
      %v471 = vld [vmem:[%s253 + $0x1c] sm:$0xf]
      %v472 = vld [vmem:[%s253 + $0x20] sm:$0xf]
      %v473 = vld [vmem:[%s253 + $0x24] sm:$0xf]
      %v474 = vld [vmem:[%s253 + $0x28] sm:$0xf]
      %v475 = vld [vmem:[%s253 + $0x2c] sm:$0xf]
      %v476 = vld [vmem:[%s253 + $0x30] sm:$0xf]
      %v477 = vld [vmem:[%s253 + $0x34] sm:$0xf]
      %v478 = vld [vmem:[%s253 + $0x38] sm:$0xf]
      %v479 = vld [vmem:[%s253 + $0x3c] sm:$0xf]
      %v480 = vld [vmem:[%s253 + $0x40] sm:$0xf]
      %v481 = vld [vmem:[%s253 + $0x44] sm:$0xf]
      %v482 = vld [vmem:[%s253 + $0x48] sm:$0xf]
      %v483 = vld [vmem:[%s253 + $0x4c] sm:$0xf]
      %v484 = vld [vmem:[%s253 + $0x50] sm:$0xf]
      %v485 = vld [vmem:[%s253 + $0x54] sm:$0xf]
      %v486 = vld [vmem:[%s253 + $0x58] sm:$0xf]
      %v487 = vld [vmem:[%s253 + $0x5c] sm:$0xf]
      %v488 = vld [vmem:[%s253 + $0x60] sm:$0xf]
      %v489 = vld [vmem:[%s253 + $0x64] sm:$0xf]
      %v490 = vld [vmem:[%s253 + $0x68] sm:$0xf]
      %v491 = vld [vmem:[%s253 + $0x6c] sm:$0xf]
      %v492 = vld [vmem:[%s253 + $0x70] sm:$0xf]
      %v493 = vld [vmem:[%s253 + $0x74] sm:$0xf]
      %v494 = vld [vmem:[%s253 + $0x78] sm:$0xf]
      %v495 = vld [vmem:[%s253 + $0x7c] sm:$0xf]
      %v560 = vunpack.c.l.b16 %v400
      %v561 = vunpack.c.h.b16 %v400
      %v562 = vunpack.c.l.b16 %v401
      %v563 = vunpack.c.h.b16 %v401
      %v564 = vunpack.c.l.b16 %v402
      %v565 = vunpack.c.h.b16 %v402
      %v566 = vunpack.c.l.b16 %v403
      %v567 = vunpack.c.h.b16 %v403
      %v568 = vunpack.c.l.b16 %v404
      %v569 = vunpack.c.h.b16 %v404
      %v570 = vunpack.c.l.b16 %v405
      %v571 = vunpack.c.h.b16 %v405
      %v572 = vunpack.c.l.b16 %v406
      %v573 = vunpack.c.h.b16 %v406
      %v574 = vunpack.c.l.b16 %v407
      %v575 = vunpack.c.h.b16 %v407
      %v576 = vunpack.c.l.b16 %v408
      %v577 = vunpack.c.h.b16 %v408
      %v578 = vunpack.c.l.b16 %v409
      %v579 = vunpack.c.h.b16 %v409
      %v580 = vunpack.c.l.b16 %v410
      %v581 = vunpack.c.h.b16 %v410
      %v582 = vunpack.c.l.b16 %v411
      %v583 = vunpack.c.h.b16 %v411
      %v584 = vunpack.c.l.b16 %v412
      %v585 = vunpack.c.h.b16 %v412
      %v586 = vunpack.c.l.b16 %v413
      %v587 = vunpack.c.h.b16 %v413
      %v588 = vunpack.c.l.b16 %v414
      %v589 = vunpack.c.h.b16 %v414
      %v590 = vunpack.c.l.b16 %v415
      %v591 = vunpack.c.h.b16 %v415
      %v592 = vunpack.c.l.b16 %v416
      %v593 = vunpack.c.h.b16 %v416
      %v594 = vunpack.c.l.b16 %v417
      %v595 = vunpack.c.h.b16 %v417
      %v596 = vunpack.c.l.b16 %v418
      %v597 = vunpack.c.h.b16 %v418
      %v598 = vunpack.c.l.b16 %v419
      %v599 = vunpack.c.h.b16 %v419
      %v600 = vunpack.c.l.b16 %v420
      %v601 = vunpack.c.h.b16 %v420
      %v602 = vunpack.c.l.b16 %v421
      %v603 = vunpack.c.h.b16 %v421
      %v604 = vunpack.c.l.b16 %v422
      %v605 = vunpack.c.h.b16 %v422
      %v606 = vunpack.c.l.b16 %v423
      %v607 = vunpack.c.h.b16 %v423
      %v608 = vunpack.c.l.b16 %v424
      %v609 = vunpack.c.h.b16 %v424
      %v610 = vunpack.c.l.b16 %v425
      %v611 = vunpack.c.h.b16 %v425
      %v612 = vunpack.c.l.b16 %v426
      %v613 = vunpack.c.h.b16 %v426
      %v614 = vunpack.c.l.b16 %v427
      %v615 = vunpack.c.h.b16 %v427
      %v616 = vunpack.c.l.b16 %v428
      %v617 = vunpack.c.h.b16 %v428
      %v618 = vunpack.c.l.b16 %v429
      %v619 = vunpack.c.h.b16 %v429
      %v620 = vunpack.c.l.b16 %v430
      %v621 = vunpack.c.h.b16 %v430
      %v622 = vunpack.c.l.b16 %v431
      %v623 = vunpack.c.h.b16 %v431
      %v624 = vunpack.c.l.b16 %v432
      %v625 = vunpack.c.h.b16 %v432
      %v626 = vunpack.c.l.b16 %v433
      %v627 = vunpack.c.h.b16 %v433
      %v628 = vunpack.c.l.b16 %v434
      %v629 = vunpack.c.h.b16 %v434
      %v630 = vunpack.c.l.b16 %v435
      %v631 = vunpack.c.h.b16 %v435
      %v632 = vunpack.c.l.b16 %v436
      %v633 = vunpack.c.h.b16 %v436
      %v634 = vunpack.c.l.b16 %v437
      %v635 = vunpack.c.h.b16 %v437
      %v636 = vunpack.c.l.b16 %v438
      %v637 = vunpack.c.h.b16 %v438
      %v638 = vunpack.c.l.b16 %v439
      %v639 = vunpack.c.h.b16 %v439
      %v640 = vunpack.c.l.b16 %v440
      %v641 = vunpack.c.h.b16 %v440
      %v642 = vunpack.c.l.b16 %v441
      %v643 = vunpack.c.h.b16 %v441
      %v644 = vunpack.c.l.b16 %v442
      %v645 = vunpack.c.h.b16 %v442
      %v646 = vunpack.c.l.b16 %v443
      %v647 = vunpack.c.h.b16 %v443
      %v648 = vunpack.c.l.b16 %v444
      %v649 = vunpack.c.h.b16 %v444
      %v650 = vunpack.c.l.b16 %v445
      %v651 = vunpack.c.h.b16 %v445
      %v652 = vunpack.c.l.b16 %v446
      %v653 = vunpack.c.h.b16 %v446
      %v654 = vunpack.c.l.b16 %v447
      %v655 = vunpack.c.h.b16 %v447
      %v656 = vunpack.c.l.b16 %v448
      %v657 = vunpack.c.h.b16 %v448
      %v658 = vunpack.c.l.b16 %v449
      %v659 = vunpack.c.h.b16 %v449
      %v660 = vunpack.c.l.b16 %v450
      %v661 = vunpack.c.h.b16 %v450
      %v662 = vunpack.c.l.b16 %v451
      %v663 = vunpack.c.h.b16 %v451
      %v664 = vunpack.c.l.b16 %v452
      %v665 = vunpack.c.h.b16 %v452
      %v666 = vunpack.c.l.b16 %v453
      %v667 = vunpack.c.h.b16 %v453
      %v668 = vunpack.c.l.b16 %v454
      %v669 = vunpack.c.h.b16 %v454
      %v670 = vunpack.c.l.b16 %v455
      %v671 = vunpack.c.h.b16 %v455
      %v672 = vunpack.c.l.b16 %v456
      %v673 = vunpack.c.h.b16 %v456
      %v674 = vunpack.c.l.b16 %v457
      %v675 = vunpack.c.h.b16 %v457
      %v676 = vunpack.c.l.b16 %v458
      %v677 = vunpack.c.h.b16 %v458
      %v678 = vunpack.c.l.b16 %v459
      %v679 = vunpack.c.h.b16 %v459
      %v680 = vunpack.c.l.b16 %v460
      %v681 = vunpack.c.h.b16 %v460
      %v682 = vunpack.c.l.b16 %v461
      %v683 = vunpack.c.h.b16 %v461
      %v684 = vunpack.c.l.b16 %v462
      %v685 = vunpack.c.h.b16 %v462
      %v686 = vunpack.c.l.b16 %v463
      %v687 = vunpack.c.h.b16 %v463
      %v688 = vpack.c.b16 %v562, %v560
      %v689 = vpack.c.b16 %v563, %v561
      %v690 = vpack.c.b16 %v566, %v564
      %v691 = vpack.c.b16 %v567, %v565
      %v692 = vpack.c.b16 %v570, %v568
      %v693 = vpack.c.b16 %v571, %v569
      %v694 = vpack.c.b16 %v574, %v572
      %v695 = vpack.c.b16 %v575, %v573
      %v696 = vpack.c.b16 %v578, %v576
      %v697 = vpack.c.b16 %v579, %v577
      %v698 = vpack.c.b16 %v582, %v580
      %v699 = vpack.c.b16 %v583, %v581
      %v700 = vpack.c.b16 %v586, %v584
      %v701 = vpack.c.b16 %v587, %v585
      %v702 = vpack.c.b16 %v590, %v588
      %v703 = vpack.c.b16 %v591, %v589
      %v704 = vpack.c.b16 %v594, %v592
      %v705 = vpack.c.b16 %v595, %v593
      %v706 = vpack.c.b16 %v598, %v596
      %v707 = vpack.c.b16 %v599, %v597
      %v708 = vpack.c.b16 %v602, %v600
      %v709 = vpack.c.b16 %v603, %v601
      %v710 = vpack.c.b16 %v606, %v604
      %v711 = vpack.c.b16 %v607, %v605
      %v712 = vpack.c.b16 %v610, %v608
      %v713 = vpack.c.b16 %v611, %v609
      %v714 = vpack.c.b16 %v614, %v612
      %v715 = vpack.c.b16 %v615, %v613
      %v716 = vpack.c.b16 %v618, %v616
      %v717 = vpack.c.b16 %v619, %v617
      %v718 = vpack.c.b16 %v622, %v620
      %v719 = vpack.c.b16 %v623, %v621
      %v720 = vpack.c.b16 %v626, %v624
      %v721 = vpack.c.b16 %v627, %v625
      %v722 = vpack.c.b16 %v630, %v628
      %v723 = vpack.c.b16 %v631, %v629
      %v724 = vpack.c.b16 %v634, %v632
      %v725 = vpack.c.b16 %v635, %v633
      %v726 = vpack.c.b16 %v638, %v636
      %v727 = vpack.c.b16 %v639, %v637
      %v728 = vpack.c.b16 %v642, %v640
      %v729 = vpack.c.b16 %v643, %v641
      %v730 = vpack.c.b16 %v646, %v644
      %v731 = vpack.c.b16 %v647, %v645
      %v732 = vpack.c.b16 %v650, %v648
      %v733 = vpack.c.b16 %v651, %v649
      %v734 = vpack.c.b16 %v654, %v652
      %v735 = vpack.c.b16 %v655, %v653
      %v736 = vpack.c.b16 %v658, %v656
      %v737 = vpack.c.b16 %v659, %v657
      %v738 = vpack.c.b16 %v662, %v660
      %v739 = vpack.c.b16 %v663, %v661
      %v740 = vpack.c.b16 %v666, %v664
      %v741 = vpack.c.b16 %v667, %v665
      %v742 = vpack.c.b16 %v670, %v668
      %v743 = vpack.c.b16 %v671, %v669
      %v744 = vpack.c.b16 %v674, %v672
      %v745 = vpack.c.b16 %v675, %v673
      %v746 = vpack.c.b16 %v678, %v676
      %v747 = vpack.c.b16 %v679, %v677
      %v748 = vpack.c.b16 %v682, %v680
      %v749 = vpack.c.b16 %v683, %v681
      %v750 = vpack.c.b16 %v686, %v684
      %v751 = vpack.c.b16 %v687, %v685
      %v848 = vunpack.c.l.b16 %v464
      %v849 = vunpack.c.l.b16 %v465
      %v850 = vunpack.c.l.b16 %v466
      %v851 = vunpack.c.l.b16 %v467
      %v852 = vunpack.c.l.b16 %v468
      %v853 = vunpack.c.l.b16 %v469
      %v854 = vunpack.c.l.b16 %v470
      %v855 = vunpack.c.l.b16 %v471
      %v856 = vunpack.c.l.b16 %v472
      %v857 = vunpack.c.l.b16 %v473
      %v858 = vunpack.c.l.b16 %v474
      %v859 = vunpack.c.l.b16 %v475
      %v860 = vunpack.c.l.b16 %v476
      %v861 = vunpack.c.l.b16 %v477
      %v862 = vunpack.c.l.b16 %v478
      %v863 = vunpack.c.l.b16 %v479
      %v864 = vunpack.c.l.b16 %v480
      %v865 = vunpack.c.l.b16 %v481
      %v866 = vunpack.c.l.b16 %v482
      %v867 = vunpack.c.l.b16 %v483
      %v868 = vunpack.c.l.b16 %v484
      %v869 = vunpack.c.l.b16 %v485
      %v870 = vunpack.c.l.b16 %v486
      %v871 = vunpack.c.l.b16 %v487
      %v872 = vunpack.c.l.b16 %v488
      %v873 = vunpack.c.l.b16 %v489
      %v874 = vunpack.c.l.b16 %v490
      %v875 = vunpack.c.l.b16 %v491
      %v876 = vunpack.c.l.b16 %v492
      %v877 = vunpack.c.l.b16 %v493
      %v878 = vunpack.c.l.b16 %v494
      %v879 = vunpack.c.l.b16 %v495
      %v880 = vpack.c.b16 %v849, %v848
      %v881 = vpack.c.b16 %v851, %v850
      %v882 = vpack.c.b16 %v853, %v852
      %v883 = vpack.c.b16 %v855, %v854
      %v884 = vpack.c.b16 %v857, %v856
      %v885 = vpack.c.b16 %v859, %v858
      %v886 = vpack.c.b16 %v861, %v860
      %v887 = vpack.c.b16 %v863, %v862
      %v888 = vpack.c.b16 %v865, %v864
      %v889 = vpack.c.b16 %v867, %v866
      %v890 = vpack.c.b16 %v869, %v868
      %v891 = vpack.c.b16 %v871, %v870
      %v892 = vpack.c.b16 %v873, %v872
      %v893 = vpack.c.b16 %v875, %v874
      %v894 = vpack.c.b16 %v877, %v876
      %v895 = vpack.c.b16 %v879, %v878
      %912 = vmatprep.subr.bf16.mxu0 0
      %913 = vmatpush1.bf16.msra.mxu0 %v887
      %914 = vmatprep.subr.bf16.mxu0 0
      %915 = vmatpush1.bf16.msra.mxu0 %v886
      %916 = vmatprep.subr.bf16.mxu0 0
      %917 = vmatpush1.bf16.msra.mxu0 %v885
      %918 = vmatprep.subr.bf16.mxu0 0
      %919 = vmatpush1.bf16.msra.mxu0 %v884
      %920 = vmatprep.subr.bf16.mxu0 0
      %921 = vmatpush1.bf16.msra.mxu0 %v883
      %922 = vmatprep.subr.bf16.mxu0 0
      %923 = vmatpush1.bf16.msra.mxu0 %v882
      %924 = vmatprep.subr.bf16.mxu0 0
      %925 = vmatpush1.bf16.msra.mxu0 %v881
      %926 = vmatprep.subr.bf16.mxu0 0
      %927 = vmatpush1.bf16.msra.mxu0 %v880
      %928 = vmatprep.subr.bf16.mxu0 0
      %929 = vmatpush2.bf16.msra.mxu0 %v895
      %930 = vmatprep.subr.bf16.mxu0 0
      %931 = vmatpush2.bf16.msra.mxu0 %v894
      %932 = vmatprep.subr.bf16.mxu0 0
      %933 = vmatpush2.bf16.msra.mxu0 %v893
      %934 = vmatprep.subr.bf16.mxu0 0
      %935 = vmatpush2.bf16.msra.mxu0 %v892
      %936 = vmatprep.subr.bf16.mxu0 0
      %937 = vmatpush2.bf16.msra.mxu0 %v891
      %938 = vmatprep.subr.bf16.mxu0 0
      %939 = vmatpush2.bf16.msra.mxu0 %v890
      %940 = vmatprep.subr.bf16.mxu0 0
      %941 = vmatpush2.bf16.msra.mxu0 %v889
      %942 = vmatprep.subr.bf16.mxu0 0
      %943 = vmatpush2.bf16.msra.mxu0 %v888
      %944 = vmatprep.mubr.bf16.mxu0 %v689
      %945 = vmatmul.mubr.bf16.gmra.mxu0 %v688
      %v946 = vpop.f32.mrf.mxu0
      %v947 = vadd.f32 0.0, %v946
      %v948 = vpop.f32.mrf.mxu0
      %v949 = vpop.f32.mrf.mxu0
      %v950 = vadd.f32 0.0, %v949
      %v951 = vpop.f32.mrf.mxu0
      %952 = vmatprep.mubr.bf16.mxu0 %v691
      %953 = vmatmul.mubr.bf16.gmra.mxu0 %v690
      %v954 = vpop.f32.mrf.mxu0
      %v955 = vadd.f32 0.0, %v954
      %v956 = vpop.f32.mrf.mxu0
      %v957 = vpop.f32.mrf.mxu0
      %v958 = vadd.f32 0.0, %v957
      %v959 = vpop.f32.mrf.mxu0
      %960 = vmatprep.mubr.bf16.mxu0 %v693
      %961 = vmatmul.mubr.bf16.gmra.mxu0 %v692
      %v962 = vpop.f32.mrf.mxu0
      %v963 = vadd.f32 0.0, %v962
      %v964 = vpop.f32.mrf.mxu0
      %v965 = vpop.f32.mrf.mxu0
      %v966 = vadd.f32 0.0, %v965
      %v967 = vpop.f32.mrf.mxu0
      %968 = vmatprep.mubr.bf16.mxu0 %v695
      %969 = vmatmul.mubr.bf16.gmra.mxu0 %v694
      %v970 = vpop.f32.mrf.mxu0
      %v971 = vadd.f32 0.0, %v970
      %v972 = vpop.f32.mrf.mxu0
      %v973 = vpop.f32.mrf.mxu0
      %v974 = vadd.f32 0.0, %v973
      %v975 = vpop.f32.mrf.mxu0
      %976 = vmatprep.mubr.bf16.mxu0 %v697
      %977 = vmatmul.mubr.bf16.gmra.mxu0 %v696
      %v978 = vpop.f32.mrf.mxu0
      %v979 = vadd.f32 0.0, %v978
      %v980 = vpop.f32.mrf.mxu0
      %v981 = vpop.f32.mrf.mxu0
      %v982 = vadd.f32 0.0, %v981
      %v983 = vpop.f32.mrf.mxu0
      %984 = vmatprep.mubr.bf16.mxu0 %v699
      %985 = vmatmul.mubr.bf16.gmra.mxu0 %v698
      %v986 = vpop.f32.mrf.mxu0
      %v987 = vadd.f32 0.0, %v986
      %v988 = vpop.f32.mrf.mxu0
      %v989 = vpop.f32.mrf.mxu0
      %v990 = vadd.f32 0.0, %v989
      %v991 = vpop.f32.mrf.mxu0
      %992 = vmatprep.mubr.bf16.mxu0 %v701
      %993 = vmatmul.mubr.bf16.gmra.mxu0 %v700
      %v994 = vpop.f32.mrf.mxu0
      %v995 = vadd.f32 0.0, %v994
      %v996 = vpop.f32.mrf.mxu0
      %v997 = vpop.f32.mrf.mxu0
      %v998 = vadd.f32 0.0, %v997
      %v999 = vpop.f32.mrf.mxu0
      %1000 = vmatprep.mubr.bf16.mxu0 %v703
      %1001 = vmatmul.mubr.bf16.gmra.mxu0 %v702
      %v1002 = vpop.f32.mrf.mxu0
      %v1003 = vadd.f32 0.0, %v1002
      %v1004 = vpop.f32.mrf.mxu0
      %v1005 = vpop.f32.mrf.mxu0
      %v1006 = vadd.f32 0.0, %v1005
      %v1007 = vpop.f32.mrf.mxu0
      %1008 = vmatprep.mubr.bf16.mxu0 %v705
      %1009 = vmatmul.mubr.bf16.gmra.mxu0 %v704
      %v1010 = vpop.f32.mrf.mxu0
      %v1011 = vadd.f32 0.0, %v1010
      %v1012 = vpop.f32.mrf.mxu0
      %v1013 = vpop.f32.mrf.mxu0
      %v1014 = vadd.f32 0.0, %v1013
      %v1015 = vpop.f32.mrf.mxu0
      %1016 = vmatprep.mubr.bf16.mxu0 %v707
      %1017 = vmatmul.mubr.bf16.gmra.mxu0 %v706
      %v1018 = vpop.f32.mrf.mxu0
      %v1019 = vadd.f32 0.0, %v1018
      %v1020 = vpop.f32.mrf.mxu0
      %v1021 = vpop.f32.mrf.mxu0
      %v1022 = vadd.f32 0.0, %v1021
      %v1023 = vpop.f32.mrf.mxu0
      %1024 = vmatprep.mubr.bf16.mxu0 %v709
      %1025 = vmatmul.mubr.bf16.gmra.mxu0 %v708
      %v1026 = vpop.f32.mrf.mxu0
      %v1027 = vadd.f32 0.0, %v1026
      %v1028 = vpop.f32.mrf.mxu0
      %v1029 = vpop.f32.mrf.mxu0
      %v1030 = vadd.f32 0.0, %v1029
      %v1031 = vpop.f32.mrf.mxu0
      %1032 = vmatprep.mubr.bf16.mxu0 %v711
      %1033 = vmatmul.mubr.bf16.gmra.mxu0 %v710
      %v1034 = vpop.f32.mrf.mxu0
      %v1035 = vadd.f32 0.0, %v1034
      %v1036 = vpop.f32.mrf.mxu0
      %v1037 = vpop.f32.mrf.mxu0
      %v1038 = vadd.f32 0.0, %v1037
      %v1039 = vpop.f32.mrf.mxu0
      %1040 = vmatprep.mubr.bf16.mxu0 %v713
      %1041 = vmatmul.mubr.bf16.gmra.mxu0 %v712
      %v1042 = vpop.f32.mrf.mxu0
      %v1043 = vadd.f32 0.0, %v1042
      %v1044 = vpop.f32.mrf.mxu0
      %v1045 = vpop.f32.mrf.mxu0
      %v1046 = vadd.f32 0.0, %v1045
      %v1047 = vpop.f32.mrf.mxu0
      %1048 = vmatprep.mubr.bf16.mxu0 %v715
      %1049 = vmatmul.mubr.bf16.gmra.mxu0 %v714
      %v1050 = vpop.f32.mrf.mxu0
      %v1051 = vadd.f32 0.0, %v1050
      %v1052 = vpop.f32.mrf.mxu0
      %v1053 = vpop.f32.mrf.mxu0
      %v1054 = vadd.f32 0.0, %v1053
      %v1055 = vpop.f32.mrf.mxu0
      %1056 = vmatprep.mubr.bf16.mxu0 %v717
      %1057 = vmatmul.mubr.bf16.gmra.mxu0 %v716
      %v1058 = vpop.f32.mrf.mxu0
      %v1059 = vadd.f32 0.0, %v1058
      %v1060 = vpop.f32.mrf.mxu0
      %v1061 = vpop.f32.mrf.mxu0
      %v1062 = vadd.f32 0.0, %v1061
      %v1063 = vpop.f32.mrf.mxu0
      %1064 = vmatprep.mubr.bf16.mxu0 %v719
      %1065 = vmatmul.mubr.bf16.gmra.mxu0 %v718
      %v1066 = vpop.f32.mrf.mxu0
      %v1067 = vadd.f32 0.0, %v1066
      %v1068 = vpop.f32.mrf.mxu0
      %v1069 = vpop.f32.mrf.mxu0
      %v1070 = vadd.f32 0.0, %v1069
      %v1071 = vpop.f32.mrf.mxu0
      %1072 = vmatprep.mubr.bf16.mxu0 %v721
      %1073 = vmatmul.mubr.bf16.gmra.mxu0 %v720
      %v1074 = vpop.f32.mrf.mxu0
      %v1075 = vadd.f32 0.0, %v1074
      %v1076 = vpop.f32.mrf.mxu0
      %v1077 = vpop.f32.mrf.mxu0
      %v1078 = vadd.f32 0.0, %v1077
      %v1079 = vpop.f32.mrf.mxu0
      %1080 = vmatprep.mubr.bf16.mxu0 %v723
      %1081 = vmatmul.mubr.bf16.gmra.mxu0 %v722
      %v1082 = vpop.f32.mrf.mxu0
      %v1083 = vadd.f32 0.0, %v1082
      %v1084 = vpop.f32.mrf.mxu0
      %v1085 = vpop.f32.mrf.mxu0
      %v1086 = vadd.f32 0.0, %v1085
      %v1087 = vpop.f32.mrf.mxu0
      %1088 = vmatprep.mubr.bf16.mxu0 %v725
      %1089 = vmatmul.mubr.bf16.gmra.mxu0 %v724
      %v1090 = vpop.f32.mrf.mxu0
      %v1091 = vadd.f32 0.0, %v1090
      %v1092 = vpop.f32.mrf.mxu0
      %v1093 = vpop.f32.mrf.mxu0
      %v1094 = vadd.f32 0.0, %v1093
      %v1095 = vpop.f32.mrf.mxu0
      %1096 = vmatprep.mubr.bf16.mxu0 %v727
      %1097 = vmatmul.mubr.bf16.gmra.mxu0 %v726
      %v1098 = vpop.f32.mrf.mxu0
      %v1099 = vadd.f32 0.0, %v1098
      %v1100 = vpop.f32.mrf.mxu0
      %v1101 = vpop.f32.mrf.mxu0
      %v1102 = vadd.f32 0.0, %v1101
      %v1103 = vpop.f32.mrf.mxu0
      %1104 = vmatprep.mubr.bf16.mxu0 %v729
      %1105 = vmatmul.mubr.bf16.gmra.mxu0 %v728
      %v1106 = vpop.f32.mrf.mxu0
      %v1107 = vadd.f32 0.0, %v1106
      %v1108 = vpop.f32.mrf.mxu0
      %v1109 = vpop.f32.mrf.mxu0
      %v1110 = vadd.f32 0.0, %v1109
      %v1111 = vpop.f32.mrf.mxu0
      %1112 = vmatprep.mubr.bf16.mxu0 %v731
      %1113 = vmatmul.mubr.bf16.gmra.mxu0 %v730
      %v1114 = vpop.f32.mrf.mxu0
      %v1115 = vadd.f32 0.0, %v1114
      %v1116 = vpop.f32.mrf.mxu0
      %v1117 = vpop.f32.mrf.mxu0
      %v1118 = vadd.f32 0.0, %v1117
      %v1119 = vpop.f32.mrf.mxu0
      %1120 = vmatprep.mubr.bf16.mxu0 %v733
      %1121 = vmatmul.mubr.bf16.gmra.mxu0 %v732
      %v1122 = vpop.f32.mrf.mxu0
      %v1123 = vadd.f32 0.0, %v1122
      %v1124 = vpop.f32.mrf.mxu0
      %v1125 = vpop.f32.mrf.mxu0
      %v1126 = vadd.f32 0.0, %v1125
      %v1127 = vpop.f32.mrf.mxu0
      %1128 = vmatprep.mubr.bf16.mxu0 %v735
      %1129 = vmatmul.mubr.bf16.gmra.mxu0 %v734
      %v1130 = vpop.f32.mrf.mxu0
      %v1131 = vadd.f32 0.0, %v1130
      %v1132 = vpop.f32.mrf.mxu0
      %v1133 = vpop.f32.mrf.mxu0
      %v1134 = vadd.f32 0.0, %v1133
      %v1135 = vpop.f32.mrf.mxu0
      %1136 = vmatprep.mubr.bf16.mxu0 %v737
      %1137 = vmatmul.mubr.bf16.gmra.mxu0 %v736
      %v1138 = vpop.f32.mrf.mxu0
      %v1139 = vadd.f32 0.0, %v1138
      %v1140 = vpop.f32.mrf.mxu0
      %v1141 = vpop.f32.mrf.mxu0
      %v1142 = vadd.f32 0.0, %v1141
      %v1143 = vpop.f32.mrf.mxu0
      %1144 = vmatprep.mubr.bf16.mxu0 %v739
      %1145 = vmatmul.mubr.bf16.gmra.mxu0 %v738
      %v1146 = vpop.f32.mrf.mxu0
      %v1147 = vadd.f32 0.0, %v1146
      %v1148 = vpop.f32.mrf.mxu0
      %v1149 = vpop.f32.mrf.mxu0
      %v1150 = vadd.f32 0.0, %v1149
      %v1151 = vpop.f32.mrf.mxu0
      %1152 = vmatprep.mubr.bf16.mxu0 %v741
      %1153 = vmatmul.mubr.bf16.gmra.mxu0 %v740
      %v1154 = vpop.f32.mrf.mxu0
      %v1155 = vadd.f32 0.0, %v1154
      %v1156 = vpop.f32.mrf.mxu0
      %v1157 = vpop.f32.mrf.mxu0
      %v1158 = vadd.f32 0.0, %v1157
      %v1159 = vpop.f32.mrf.mxu0
      %1160 = vmatprep.mubr.bf16.mxu0 %v743
      %1161 = vmatmul.mubr.bf16.gmra.mxu0 %v742
      %v1162 = vpop.f32.mrf.mxu0
      %v1163 = vadd.f32 0.0, %v1162
      %v1164 = vpop.f32.mrf.mxu0
      %v1165 = vpop.f32.mrf.mxu0
      %v1166 = vadd.f32 0.0, %v1165
      %v1167 = vpop.f32.mrf.mxu0
      %1168 = vmatprep.mubr.bf16.mxu0 %v745
      %1169 = vmatmul.mubr.bf16.gmra.mxu0 %v744
      %v1170 = vpop.f32.mrf.mxu0
      %v1171 = vadd.f32 0.0, %v1170
      %v1172 = vpop.f32.mrf.mxu0
      %v1173 = vpop.f32.mrf.mxu0
      %v1174 = vadd.f32 0.0, %v1173
      %v1175 = vpop.f32.mrf.mxu0
      %1176 = vmatprep.mubr.bf16.mxu0 %v747
      %1177 = vmatmul.mubr.bf16.gmra.mxu0 %v746
      %v1178 = vpop.f32.mrf.mxu0
      %v1179 = vadd.f32 0.0, %v1178
      %v1180 = vpop.f32.mrf.mxu0
      %v1181 = vpop.f32.mrf.mxu0
      %v1182 = vadd.f32 0.0, %v1181
      %v1183 = vpop.f32.mrf.mxu0
      %1184 = vmatprep.mubr.bf16.mxu0 %v749
      %1185 = vmatmul.mubr.bf16.gmra.mxu0 %v748
      %v1186 = vpop.f32.mrf.mxu0
      %v1187 = vadd.f32 0.0, %v1186
      %v1188 = vpop.f32.mrf.mxu0
      %v1189 = vpop.f32.mrf.mxu0
      %v1190 = vadd.f32 0.0, %v1189
      %v1191 = vpop.f32.mrf.mxu0
      %1192 = vmatprep.mubr.bf16.mxu0 %v751
      %1193 = vmatmul.mubr.bf16.gmra.mxu0 %v750
      %v1194 = vpop.f32.mrf.mxu0
      %v1195 = vadd.f32 0.0, %v1194
      %v1196 = vpop.f32.mrf.mxu0
      %v1197 = vpop.f32.mrf.mxu0
      %v1198 = vadd.f32 0.0, %v1197
      %v1199 = vpop.f32.mrf.mxu0
      %1200 = vdwg.mxu0
      %v1201 = vadd.f32 %v336, %v947
      %v1202 = vadd.f32 %v337, %v950
      %v1203 = vadd.f32 %v338, %v955
      %v1204 = vadd.f32 %v339, %v958
      %v1205 = vadd.f32 %v340, %v963
      %v1206 = vadd.f32 %v341, %v966
      %v1207 = vadd.f32 %v342, %v971
      %v1208 = vadd.f32 %v343, %v974
      %v1209 = vadd.f32 %v344, %v979
      %v1210 = vadd.f32 %v345, %v982
      %v1211 = vadd.f32 %v346, %v987
      %v1212 = vadd.f32 %v347, %v990
      %v1213 = vadd.f32 %v348, %v995
      %v1214 = vadd.f32 %v349, %v998
      %v1215 = vadd.f32 %v350, %v1003
      %v1216 = vadd.f32 %v351, %v1006
      %v1217 = vadd.f32 %v352, %v1011
      %v1218 = vadd.f32 %v353, %v1014
      %v1219 = vadd.f32 %v354, %v1019
      %v1220 = vadd.f32 %v355, %v1022
      %v1221 = vadd.f32 %v356, %v1027
      %v1222 = vadd.f32 %v357, %v1030
      %v1223 = vadd.f32 %v358, %v1035
      %v1224 = vadd.f32 %v359, %v1038
      %v1225 = vadd.f32 %v360, %v1043
      %v1226 = vadd.f32 %v361, %v1046
      %v1227 = vadd.f32 %v362, %v1051
      %v1228 = vadd.f32 %v363, %v1054
      %v1229 = vadd.f32 %v364, %v1059
      %v1230 = vadd.f32 %v365, %v1062
      %v1231 = vadd.f32 %v366, %v1067
      %v1232 = vadd.f32 %v367, %v1070
      %v1233 = vadd.f32 %v368, %v1075
      %v1234 = vadd.f32 %v369, %v1078
      %v1235 = vadd.f32 %v370, %v1083
      %v1236 = vadd.f32 %v371, %v1086
      %v1237 = vadd.f32 %v372, %v1091
      %v1238 = vadd.f32 %v373, %v1094
      %v1239 = vadd.f32 %v374, %v1099
      %v1240 = vadd.f32 %v375, %v1102
      %v1241 = vadd.f32 %v376, %v1107
      %v1242 = vadd.f32 %v377, %v1110
      %v1243 = vadd.f32 %v378, %v1115
      %v1244 = vadd.f32 %v379, %v1118
      %v1245 = vadd.f32 %v380, %v1123
      %v1246 = vadd.f32 %v381, %v1126
      %v1247 = vadd.f32 %v382, %v1131
      %v1248 = vadd.f32 %v383, %v1134
      %v1249 = vadd.f32 %v384, %v1139
      %v1250 = vadd.f32 %v385, %v1142
      %v1251 = vadd.f32 %v386, %v1147
      %v1252 = vadd.f32 %v387, %v1150
      %v1253 = vadd.f32 %v388, %v1155
      %v1254 = vadd.f32 %v389, %v1158
      %v1255 = vadd.f32 %v390, %v1163
      %v1256 = vadd.f32 %v391, %v1166
      %v1257 = vadd.f32 %v392, %v1171
      %v1258 = vadd.f32 %v393, %v1174
      %v1259 = vadd.f32 %v394, %v1179
      %v1260 = vadd.f32 %v395, %v1182
      %v1261 = vadd.f32 %v396, %v1187
      %v1262 = vadd.f32 %v397, %v1190
      %v1263 = vadd.f32 %v398, %v1195
      %v1264 = vadd.f32 %v399, %v1198
      %1265 = vst [vmem:[#allocation2] sm:$0xff] %v1201
      %1266 = vst [vmem:[#allocation2 + $0x8] sm:$0xff] %v1202
      %1267 = vst [vmem:[#allocation2 + $0x10] sm:$0xff] %v1203
      %1268 = vst [vmem:[#allocation2 + $0x18] sm:$0xff] %v1204
      %1269 = vst [vmem:[#allocation2 + $0x20] sm:$0xff] %v1205
      %1270 = vst [vmem:[#allocation2 + $0x28] sm:$0xff] %v1206
      %1271 = vst [vmem:[#allocation2 + $0x30] sm:$0xff] %v1207
      %1272 = vst [vmem:[#allocation2 + $0x38] sm:$0xff] %v1208
      %1273 = vst [vmem:[#allocation2 + $0x40] sm:$0xff] %v1209
      %1274 = vst [vmem:[#allocation2 + $0x48] sm:$0xff] %v1210
      %1275 = vst [vmem:[#allocation2 + $0x50] sm:$0xff] %v1211
      %1276 = vst [vmem:[#allocation2 + $0x58] sm:$0xff] %v1212
      %1277 = vst [vmem:[#allocation2 + $0x60] sm:$0xff] %v1213
      %1278 = vst [vmem:[#allocation2 + $0x68] sm:$0xff] %v1214
      %1279 = vst [vmem:[#allocation2 + $0x70] sm:$0xff] %v1215
      %1280 = vst [vmem:[#allocation2 + $0x78] sm:$0xff] %v1216
      %1281 = vst [vmem:[#allocation2 + $0x80] sm:$0xff] %v1217
      %1282 = vst [vmem:[#allocation2 + $0x88] sm:$0xff] %v1218
      %1283 = vst [vmem:[#allocation2 + $0x90] sm:$0xff] %v1219
      %1284 = vst [vmem:[#allocation2 + $0x98] sm:$0xff] %v1220
      %1285 = vst [vmem:[#allocation2 + $0xa0] sm:$0xff] %v1221
      %1286 = vst [vmem:[#allocation2 + $0xa8] sm:$0xff] %v1222
      %1287 = vst [vmem:[#allocation2 + $0xb0] sm:$0xff] %v1223
      %1288 = vst [vmem:[#allocation2 + $0xb8] sm:$0xff] %v1224
      %1289 = vst [vmem:[#allocation2 + $0xc0] sm:$0xff] %v1225
      %1290 = vst [vmem:[#allocation2 + $0xc8] sm:$0xff] %v1226
      %1291 = vst [vmem:[#allocation2 + $0xd0] sm:$0xff] %v1227
      %1292 = vst [vmem:[#allocation2 + $0xd8] sm:$0xff] %v1228
      %1293 = vst [vmem:[#allocation2 + $0xe0] sm:$0xff] %v1229
      %1294 = vst [vmem:[#allocation2 + $0xe8] sm:$0xff] %v1230
      %1295 = vst [vmem:[#allocation2 + $0xf0] sm:$0xff] %v1231
      %1296 = vst [vmem:[#allocation2 + $0xf8] sm:$0xff] %v1232
      %1297 = vst [vmem:[#allocation2 + $0x100] sm:$0xff] %v1233
      %1298 = vst [vmem:[#allocation2 + $0x108] sm:$0xff] %v1234
      %1299 = vst [vmem:[#allocation2 + $0x110] sm:$0xff] %v1235
      %1300 = vst [vmem:[#allocation2 + $0x118] sm:$0xff] %v1236
      %1301 = vst [vmem:[#allocation2 + $0x120] sm:$0xff] %v1237
      %1302 = vst [vmem:[#allocation2 + $0x128] sm:$0xff] %v1238
      %1303 = vst [vmem:[#allocation2 + $0x130] sm:$0xff] %v1239
      %1304 = vst [vmem:[#allocation2 + $0x138] sm:$0xff] %v1240
      %1305 = vst [vmem:[#allocation2 + $0x140] sm:$0xff] %v1241
      %1306 = vst [vmem:[#allocation2 + $0x148] sm:$0xff] %v1242
      %1307 = vst [vmem:[#allocation2 + $0x150] sm:$0xff] %v1243
      %1308 = vst [vmem:[#allocation2 + $0x158] sm:$0xff] %v1244
      %1309 = vst [vmem:[#allocation2 + $0x160] sm:$0xff] %v1245
      %1310 = vst [vmem:[#allocation2 + $0x168] sm:$0xff] %v1246
      %1311 = vst [vmem:[#allocation2 + $0x170] sm:$0xff] %v1247
      %1312 = vst [vmem:[#allocation2 + $0x178] sm:$0xff] %v1248
      %1313 = vst [vmem:[#allocation2 + $0x180] sm:$0xff] %v1249
      %1314 = vst [vmem:[#allocation2 + $0x188] sm:$0xff] %v1250
      %1315 = vst [vmem:[#allocation2 + $0x190] sm:$0xff] %v1251
      %1316 = vst [vmem:[#allocation2 + $0x198] sm:$0xff] %v1252
      %1317 = vst [vmem:[#allocation2 + $0x1a0] sm:$0xff] %v1253
      %1318 = vst [vmem:[#allocation2 + $0x1a8] sm:$0xff] %v1254
      %1319 = vst [vmem:[#allocation2 + $0x1b0] sm:$0xff] %v1255
      %1320 = vst [vmem:[#allocation2 + $0x1b8] sm:$0xff] %v1256
      %1321 = vst [vmem:[#allocation2 + $0x1c0] sm:$0xff] %v1257
      %1322 = vst [vmem:[#allocation2 + $0x1c8] sm:$0xff] %v1258
      %1323 = vst [vmem:[#allocation2 + $0x1d0] sm:$0xff] %v1259
      %1324 = vst [vmem:[#allocation2 + $0x1d8] sm:$0xff] %v1260
      %1325 = vst [vmem:[#allocation2 + $0x1e0] sm:$0xff] %v1261
      %1326 = vst [vmem:[#allocation2 + $0x1e8] sm:$0xff] %v1262
      %1327 = vst [vmem:[#allocation2 + $0x1f0] sm:$0xff] %v1263
      %1328 = vst [vmem:[#allocation2 + $0x1f8] sm:$0xff] %v1264
      // Predicated region
      $region37: #{_conv2d_impl.1} parent=31 // pred_check
        %p1329 = pneg %p268
      $region38: #{_conv2d_impl.1} parent=31 // pred_check_branch
        %1331 = sbr.rel (%p1329) target = $region40
      $region39: #{_conv2d_impl.1} parent=31 // pred_region
        %v1332 = vld [vmem:[#allocation2] sm:$0xff]
        %v1333 = vld [vmem:[#allocation2 + $0x8] sm:$0xff]
        %v1334 = vld [vmem:[#allocation2 + $0x10] sm:$0xff]
        %v1335 = vld [vmem:[#allocation2 + $0x18] sm:$0xff]
        %v1336 = vld [vmem:[#allocation2 + $0x20] sm:$0xff]
        %v1337 = vld [vmem:[#allocation2 + $0x28] sm:$0xff]
        %v1338 = vld [vmem:[#allocation2 + $0x30] sm:$0xff]
        %v1339 = vld [vmem:[#allocation2 + $0x38] sm:$0xff]
        %v1340 = vld [vmem:[#allocation2 + $0x40] sm:$0xff]
        %v1341 = vld [vmem:[#allocation2 + $0x48] sm:$0xff]
        %v1342 = vld [vmem:[#allocation2 + $0x50] sm:$0xff]
        %v1343 = vld [vmem:[#allocation2 + $0x58] sm:$0xff]
        %v1344 = vld [vmem:[#allocation2 + $0x60] sm:$0xff]
        %v1345 = vld [vmem:[#allocation2 + $0x68] sm:$0xff]
        %v1346 = vld [vmem:[#allocation2 + $0x70] sm:$0xff]
        %v1347 = vld [vmem:[#allocation2 + $0x78] sm:$0xff]
        %v1348 = vld [vmem:[#allocation2 + $0x80] sm:$0xff]
        %v1349 = vld [vmem:[#allocation2 + $0x88] sm:$0xff]
        %v1350 = vld [vmem:[#allocation2 + $0x90] sm:$0xff]
        %v1351 = vld [vmem:[#allocation2 + $0x98] sm:$0xff]
        %v1352 = vld [vmem:[#allocation2 + $0xa0] sm:$0xff]
        %v1353 = vld [vmem:[#allocation2 + $0xa8] sm:$0xff]
        %v1354 = vld [vmem:[#allocation2 + $0xb0] sm:$0xff]
        %v1355 = vld [vmem:[#allocation2 + $0xb8] sm:$0xff]
        %v1356 = vld [vmem:[#allocation2 + $0xc0] sm:$0xff]
        %v1357 = vld [vmem:[#allocation2 + $0xc8] sm:$0xff]
        %v1358 = vld [vmem:[#allocation2 + $0xd0] sm:$0xff]
        %v1359 = vld [vmem:[#allocation2 + $0xd8] sm:$0xff]
        %v1360 = vld [vmem:[#allocation2 + $0xe0] sm:$0xff]
        %v1361 = vld [vmem:[#allocation2 + $0xe8] sm:$0xff]
        %v1362 = vld [vmem:[#allocation2 + $0xf0] sm:$0xff]
        %v1363 = vld [vmem:[#allocation2 + $0xf8] sm:$0xff]
        %v1364 = vld [vmem:[#allocation2 + $0x100] sm:$0xff]
        %v1365 = vld [vmem:[#allocation2 + $0x108] sm:$0xff]
        %v1366 = vld [vmem:[#allocation2 + $0x110] sm:$0xff]
        %v1367 = vld [vmem:[#allocation2 + $0x118] sm:$0xff]
        %v1368 = vld [vmem:[#allocation2 + $0x120] sm:$0xff]
        %v1369 = vld [vmem:[#allocation2 + $0x128] sm:$0xff]
        %v1370 = vld [vmem:[#allocation2 + $0x130] sm:$0xff]
        %v1371 = vld [vmem:[#allocation2 + $0x138] sm:$0xff]
        %v1372 = vld [vmem:[#allocation2 + $0x140] sm:$0xff]
        %v1373 = vld [vmem:[#allocation2 + $0x148] sm:$0xff]
        %v1374 = vld [vmem:[#allocation2 + $0x150] sm:$0xff]
        %v1375 = vld [vmem:[#allocation2 + $0x158] sm:$0xff]
        %v1376 = vld [vmem:[#allocation2 + $0x160] sm:$0xff]
        %v1377 = vld [vmem:[#allocation2 + $0x168] sm:$0xff]
        %v1378 = vld [vmem:[#allocation2 + $0x170] sm:$0xff]
        %v1379 = vld [vmem:[#allocation2 + $0x178] sm:$0xff]
        %v1380 = vld [vmem:[#allocation2 + $0x180] sm:$0xff]
        %v1381 = vld [vmem:[#allocation2 + $0x188] sm:$0xff]
        %v1382 = vld [vmem:[#allocation2 + $0x190] sm:$0xff]
        %v1383 = vld [vmem:[#allocation2 + $0x198] sm:$0xff]
        %v1384 = vld [vmem:[#allocation2 + $0x1a0] sm:$0xff]
        %v1385 = vld [vmem:[#allocation2 + $0x1a8] sm:$0xff]
        %v1386 = vld [vmem:[#allocation2 + $0x1b0] sm:$0xff]
        %v1387 = vld [vmem:[#allocation2 + $0x1b8] sm:$0xff]
        %v1388 = vld [vmem:[#allocation2 + $0x1c0] sm:$0xff]
        %v1389 = vld [vmem:[#allocation2 + $0x1c8] sm:$0xff]
        %v1390 = vld [vmem:[#allocation2 + $0x1d0] sm:$0xff]
        %v1391 = vld [vmem:[#allocation2 + $0x1d8] sm:$0xff]
        %v1392 = vld [vmem:[#allocation2 + $0x1e0] sm:$0xff]
        %v1393 = vld [vmem:[#allocation2 + $0x1e8] sm:$0xff]
        %v1394 = vld [vmem:[#allocation2 + $0x1f0] sm:$0xff]
        %v1395 = vld [vmem:[#allocation2 + $0x1f8] sm:$0xff]
        %v1396 = vld [vmem:[%s257] sm:$0x1]
        %v1398 = vlaneseq
        %v1399 = vshrl.u32 %v1398, 7
        %v1400 = vsub.s32 0, %v1399
        %v1401 = vrot.slane %v1396, %v1400
        %v1403 = vadd.f32 %v1332, %v1401
        %v1404 = vadd.f32 %v1333, %v1401
        %v1405 = vadd.f32 %v1334, %v1401
        %v1406 = vadd.f32 %v1335, %v1401
        %v1407 = vadd.f32 %v1336, %v1401
        %v1408 = vadd.f32 %v1337, %v1401
        %v1409 = vadd.f32 %v1338, %v1401
        %v1410 = vadd.f32 %v1339, %v1401
        %v1411 = vadd.f32 %v1340, %v1401
        %v1412 = vadd.f32 %v1341, %v1401
        %v1413 = vadd.f32 %v1342, %v1401
        %v1414 = vadd.f32 %v1343, %v1401
        %v1415 = vadd.f32 %v1344, %v1401
        %v1416 = vadd.f32 %v1345, %v1401
        %v1417 = vadd.f32 %v1346, %v1401
        %v1418 = vadd.f32 %v1347, %v1401
        %v1419 = vadd.f32 %v1348, %v1401
        %v1420 = vadd.f32 %v1349, %v1401
        %v1421 = vadd.f32 %v1350, %v1401
        %v1422 = vadd.f32 %v1351, %v1401
        %v1423 = vadd.f32 %v1352, %v1401
        %v1424 = vadd.f32 %v1353, %v1401
        %v1425 = vadd.f32 %v1354, %v1401
        %v1426 = vadd.f32 %v1355, %v1401
        %v1427 = vadd.f32 %v1356, %v1401
        %v1428 = vadd.f32 %v1357, %v1401
        %v1429 = vadd.f32 %v1358, %v1401
        %v1430 = vadd.f32 %v1359, %v1401
        %v1431 = vadd.f32 %v1360, %v1401
        %v1432 = vadd.f32 %v1361, %v1401
        %v1433 = vadd.f32 %v1362, %v1401
        %v1434 = vadd.f32 %v1363, %v1401
        %v1435 = vadd.f32 %v1364, %v1401
        %v1436 = vadd.f32 %v1365, %v1401
        %v1437 = vadd.f32 %v1366, %v1401
        %v1438 = vadd.f32 %v1367, %v1401
        %v1439 = vadd.f32 %v1368, %v1401
        %v1440 = vadd.f32 %v1369, %v1401
        %v1441 = vadd.f32 %v1370, %v1401
        %v1442 = vadd.f32 %v1371, %v1401
        %v1443 = vadd.f32 %v1372, %v1401
        %v1444 = vadd.f32 %v1373, %v1401
        %v1445 = vadd.f32 %v1374, %v1401
        %v1446 = vadd.f32 %v1375, %v1401
        %v1447 = vadd.f32 %v1376, %v1401
        %v1448 = vadd.f32 %v1377, %v1401
        %v1449 = vadd.f32 %v1378, %v1401
        %v1450 = vadd.f32 %v1379, %v1401
        %v1451 = vadd.f32 %v1380, %v1401
        %v1452 = vadd.f32 %v1381, %v1401
        %v1453 = vadd.f32 %v1382, %v1401
        %v1454 = vadd.f32 %v1383, %v1401
        %v1455 = vadd.f32 %v1384, %v1401
        %v1456 = vadd.f32 %v1385, %v1401
        %v1457 = vadd.f32 %v1386, %v1401
        %v1458 = vadd.f32 %v1387, %v1401
        %v1459 = vadd.f32 %v1388, %v1401
        %v1460 = vadd.f32 %v1389, %v1401
        %v1461 = vadd.f32 %v1390, %v1401
        %v1462 = vadd.f32 %v1391, %v1401
        %v1463 = vadd.f32 %v1392, %v1401
        %v1464 = vadd.f32 %v1393, %v1401
        %v1465 = vadd.f32 %v1394, %v1401
        %v1466 = vadd.f32 %v1395, %v1401
        %v1467 = vpack.c.bf16 %v1404, %v1403
        %v1468 = vpack.c.bf16 %v1406, %v1405
        %v1469 = vpack.c.bf16 %v1408, %v1407
        %v1470 = vpack.c.bf16 %v1410, %v1409
        %v1471 = vpack.c.bf16 %v1412, %v1411
        %v1472 = vpack.c.bf16 %v1414, %v1413
        %v1473 = vpack.c.bf16 %v1416, %v1415
        %v1474 = vpack.c.bf16 %v1418, %v1417
        %v1475 = vpack.c.bf16 %v1420, %v1419
        %v1476 = vpack.c.bf16 %v1422, %v1421
        %v1477 = vpack.c.bf16 %v1424, %v1423
        %v1478 = vpack.c.bf16 %v1426, %v1425
        %v1479 = vpack.c.bf16 %v1428, %v1427
        %v1480 = vpack.c.bf16 %v1430, %v1429
        %v1481 = vpack.c.bf16 %v1432, %v1431
        %v1482 = vpack.c.bf16 %v1434, %v1433
        %v1483 = vpack.c.bf16 %v1436, %v1435
        %v1484 = vpack.c.bf16 %v1438, %v1437
        %v1485 = vpack.c.bf16 %v1440, %v1439
        %v1486 = vpack.c.bf16 %v1442, %v1441
        %v1487 = vpack.c.bf16 %v1444, %v1443
        %v1488 = vpack.c.bf16 %v1446, %v1445
        %v1489 = vpack.c.bf16 %v1448, %v1447
        %v1490 = vpack.c.bf16 %v1450, %v1449
        %v1491 = vpack.c.bf16 %v1452, %v1451
        %v1492 = vpack.c.bf16 %v1454, %v1453
        %v1493 = vpack.c.bf16 %v1456, %v1455
        %v1494 = vpack.c.bf16 %v1458, %v1457
        %v1495 = vpack.c.bf16 %v1460, %v1459
        %v1496 = vpack.c.bf16 %v1462, %v1461
        %v1497 = vpack.c.bf16 %v1464, %v1463
        %v1498 = vpack.c.bf16 %v1466, %v1465
        %v1531 = vunpack.c.l.b16 %v1467
        %v1532 = vunpack.c.h.b16 %v1467
        %v1533 = vunpack.c.l.b16 %v1468
        %v1534 = vunpack.c.h.b16 %v1468
        %v1535 = vunpack.c.l.b16 %v1469
        %v1536 = vunpack.c.h.b16 %v1469
        %v1537 = vunpack.c.l.b16 %v1470
        %v1538 = vunpack.c.h.b16 %v1470
        %v1539 = vunpack.c.l.b16 %v1471
        %v1540 = vunpack.c.h.b16 %v1471
        %v1541 = vunpack.c.l.b16 %v1472
        %v1542 = vunpack.c.h.b16 %v1472
        %v1543 = vunpack.c.l.b16 %v1473
        %v1544 = vunpack.c.h.b16 %v1473
        %v1545 = vunpack.c.l.b16 %v1474
        %v1546 = vunpack.c.h.b16 %v1474
        %v1547 = vunpack.c.l.b16 %v1475
        %v1548 = vunpack.c.h.b16 %v1475
        %v1549 = vunpack.c.l.b16 %v1476
        %v1550 = vunpack.c.h.b16 %v1476
        %v1551 = vunpack.c.l.b16 %v1477
        %v1552 = vunpack.c.h.b16 %v1477
        %v1553 = vunpack.c.l.b16 %v1478
        %v1554 = vunpack.c.h.b16 %v1478
        %v1555 = vunpack.c.l.b16 %v1479
        %v1556 = vunpack.c.h.b16 %v1479
        %v1557 = vunpack.c.l.b16 %v1480
        %v1558 = vunpack.c.h.b16 %v1480
        %v1559 = vunpack.c.l.b16 %v1481
        %v1560 = vunpack.c.h.b16 %v1481
        %v1561 = vunpack.c.l.b16 %v1482
        %v1562 = vunpack.c.h.b16 %v1482
        %v1563 = vunpack.c.l.b16 %v1483
        %v1564 = vunpack.c.h.b16 %v1483
        %v1565 = vunpack.c.l.b16 %v1484
        %v1566 = vunpack.c.h.b16 %v1484
        %v1567 = vunpack.c.l.b16 %v1485
        %v1568 = vunpack.c.h.b16 %v1485
        %v1569 = vunpack.c.l.b16 %v1486
        %v1570 = vunpack.c.h.b16 %v1486
        %v1571 = vunpack.c.l.b16 %v1487
        %v1572 = vunpack.c.h.b16 %v1487
        %v1573 = vunpack.c.l.b16 %v1488
        %v1574 = vunpack.c.h.b16 %v1488
        %v1575 = vunpack.c.l.b16 %v1489
        %v1576 = vunpack.c.h.b16 %v1489
        %v1577 = vunpack.c.l.b16 %v1490
        %v1578 = vunpack.c.h.b16 %v1490
        %v1579 = vunpack.c.l.b16 %v1491
        %v1580 = vunpack.c.h.b16 %v1491
        %v1581 = vunpack.c.l.b16 %v1492
        %v1582 = vunpack.c.h.b16 %v1492
        %v1583 = vunpack.c.l.b16 %v1493
        %v1584 = vunpack.c.h.b16 %v1493
        %v1585 = vunpack.c.l.b16 %v1494
        %v1586 = vunpack.c.h.b16 %v1494
        %v1587 = vunpack.c.l.b16 %v1495
        %v1588 = vunpack.c.h.b16 %v1495
        %v1589 = vunpack.c.l.b16 %v1496
        %v1590 = vunpack.c.h.b16 %v1496
        %v1591 = vunpack.c.l.b16 %v1497
        %v1592 = vunpack.c.h.b16 %v1497
        %v1593 = vunpack.c.l.b16 %v1498
        %v1594 = vunpack.c.h.b16 %v1498
        %v1595 = vpack.c.b16 %v1531, %v1531
        %v1596 = vpack.c.b16 %v1532, %v1532
        %v1597 = vpack.c.b16 %v1533, %v1533
        %v1598 = vpack.c.b16 %v1534, %v1534
        %v1599 = vpack.c.b16 %v1535, %v1535
        %v1600 = vpack.c.b16 %v1536, %v1536
        %v1601 = vpack.c.b16 %v1537, %v1537
        %v1602 = vpack.c.b16 %v1538, %v1538
        %v1603 = vpack.c.b16 %v1539, %v1539
        %v1604 = vpack.c.b16 %v1540, %v1540
        %v1605 = vpack.c.b16 %v1541, %v1541
        %v1606 = vpack.c.b16 %v1542, %v1542
        %v1607 = vpack.c.b16 %v1543, %v1543
        %v1608 = vpack.c.b16 %v1544, %v1544
        %v1609 = vpack.c.b16 %v1545, %v1545
        %v1610 = vpack.c.b16 %v1546, %v1546
        %v1611 = vpack.c.b16 %v1547, %v1547
        %v1612 = vpack.c.b16 %v1548, %v1548
        %v1613 = vpack.c.b16 %v1549, %v1549
        %v1614 = vpack.c.b16 %v1550, %v1550
        %v1615 = vpack.c.b16 %v1551, %v1551
        %v1616 = vpack.c.b16 %v1552, %v1552
        %v1617 = vpack.c.b16 %v1553, %v1553
        %v1618 = vpack.c.b16 %v1554, %v1554
        %v1619 = vpack.c.b16 %v1555, %v1555
        %v1620 = vpack.c.b16 %v1556, %v1556
        %v1621 = vpack.c.b16 %v1557, %v1557
        %v1622 = vpack.c.b16 %v1558, %v1558
        %v1623 = vpack.c.b16 %v1559, %v1559
        %v1624 = vpack.c.b16 %v1560, %v1560
        %v1625 = vpack.c.b16 %v1561, %v1561
        %v1626 = vpack.c.b16 %v1562, %v1562
        %v1627 = vpack.c.b16 %v1563, %v1563
        %v1628 = vpack.c.b16 %v1564, %v1564
        %v1629 = vpack.c.b16 %v1565, %v1565
        %v1630 = vpack.c.b16 %v1566, %v1566
        %v1631 = vpack.c.b16 %v1567, %v1567
        %v1632 = vpack.c.b16 %v1568, %v1568
        %v1633 = vpack.c.b16 %v1569, %v1569
        %v1634 = vpack.c.b16 %v1570, %v1570
        %v1635 = vpack.c.b16 %v1571, %v1571
        %v1636 = vpack.c.b16 %v1572, %v1572
        %v1637 = vpack.c.b16 %v1573, %v1573
        %v1638 = vpack.c.b16 %v1574, %v1574
        %v1639 = vpack.c.b16 %v1575, %v1575
        %v1640 = vpack.c.b16 %v1576, %v1576
        %v1641 = vpack.c.b16 %v1577, %v1577
        %v1642 = vpack.c.b16 %v1578, %v1578
        %v1643 = vpack.c.b16 %v1579, %v1579
        %v1644 = vpack.c.b16 %v1580, %v1580
        %v1645 = vpack.c.b16 %v1581, %v1581
        %v1646 = vpack.c.b16 %v1582, %v1582
        %v1647 = vpack.c.b16 %v1583, %v1583
        %v1648 = vpack.c.b16 %v1584, %v1584
        %v1649 = vpack.c.b16 %v1585, %v1585
        %v1650 = vpack.c.b16 %v1586, %v1586
        %v1651 = vpack.c.b16 %v1587, %v1587
        %v1652 = vpack.c.b16 %v1588, %v1588
        %v1653 = vpack.c.b16 %v1589, %v1589
        %v1654 = vpack.c.b16 %v1590, %v1590
        %v1655 = vpack.c.b16 %v1591, %v1591
        %v1656 = vpack.c.b16 %v1592, %v1592
        %v1657 = vpack.c.b16 %v1593, %v1593
        %v1658 = vpack.c.b16 %v1594, %v1594
        %1723 = vst [vmem:[%s265] sm:$0xf] %v1595
        %1724 = vst [vmem:[%s265 + $0x4] sm:$0xf] %v1596
        %1725 = vst [vmem:[%s265 + $0x8] sm:$0xf] %v1597
        %1726 = vst [vmem:[%s265 + $0xc] sm:$0xf] %v1598
        %1727 = vst [vmem:[%s265 + $0x10] sm:$0xf] %v1599
        %1728 = vst [vmem:[%s265 + $0x14] sm:$0xf] %v1600
        %1729 = vst [vmem:[%s265 + $0x18] sm:$0xf] %v1601
        %1730 = vst [vmem:[%s265 + $0x1c] sm:$0xf] %v1602
        %1731 = vst [vmem:[%s265 + $0x20] sm:$0xf] %v1603
        %1732 = vst [vmem:[%s265 + $0x24] sm:$0xf] %v1604
        %1733 = vst [vmem:[%s265 + $0x28] sm:$0xf] %v1605
        %1734 = vst [vmem:[%s265 + $0x2c] sm:$0xf] %v1606
        %1735 = vst [vmem:[%s265 + $0x30] sm:$0xf] %v1607
        %1736 = vst [vmem:[%s265 + $0x34] sm:$0xf] %v1608
        %1737 = vst [vmem:[%s265 + $0x38] sm:$0xf] %v1609
        %1738 = vst [vmem:[%s265 + $0x3c] sm:$0xf] %v1610
        %1739 = vst [vmem:[%s265 + $0x40] sm:$0xf] %v1611
        %1740 = vst [vmem:[%s265 + $0x44] sm:$0xf] %v1612
        %1741 = vst [vmem:[%s265 + $0x48] sm:$0xf] %v1613
        %1742 = vst [vmem:[%s265 + $0x4c] sm:$0xf] %v1614
        %1743 = vst [vmem:[%s265 + $0x50] sm:$0xf] %v1615
        %1744 = vst [vmem:[%s265 + $0x54] sm:$0xf] %v1616
        %1745 = vst [vmem:[%s265 + $0x58] sm:$0xf] %v1617
        %1746 = vst [vmem:[%s265 + $0x5c] sm:$0xf] %v1618
        %1747 = vst [vmem:[%s265 + $0x60] sm:$0xf] %v1619
        %1748 = vst [vmem:[%s265 + $0x64] sm:$0xf] %v1620
        %1749 = vst [vmem:[%s265 + $0x68] sm:$0xf] %v1621
        %1750 = vst [vmem:[%s265 + $0x6c] sm:$0xf] %v1622
        %1751 = vst [vmem:[%s265 + $0x70] sm:$0xf] %v1623
        %1752 = vst [vmem:[%s265 + $0x74] sm:$0xf] %v1624
        %1753 = vst [vmem:[%s265 + $0x78] sm:$0xf] %v1625
        %1754 = vst [vmem:[%s265 + $0x7c] sm:$0xf] %v1626
        %1755 = vst [vmem:[%s265 + $0x80] sm:$0xf] %v1627
        %1756 = vst [vmem:[%s265 + $0x84] sm:$0xf] %v1628
        %1757 = vst [vmem:[%s265 + $0x88] sm:$0xf] %v1629
        %1758 = vst [vmem:[%s265 + $0x8c] sm:$0xf] %v1630
        %1759 = vst [vmem:[%s265 + $0x90] sm:$0xf] %v1631
        %1760 = vst [vmem:[%s265 + $0x94] sm:$0xf] %v1632
        %1761 = vst [vmem:[%s265 + $0x98] sm:$0xf] %v1633
        %1762 = vst [vmem:[%s265 + $0x9c] sm:$0xf] %v1634
        %1763 = vst [vmem:[%s265 + $0xa0] sm:$0xf] %v1635
        %1764 = vst [vmem:[%s265 + $0xa4] sm:$0xf] %v1636
        %1765 = vst [vmem:[%s265 + $0xa8] sm:$0xf] %v1637
        %1766 = vst [vmem:[%s265 + $0xac] sm:$0xf] %v1638
        %1767 = vst [vmem:[%s265 + $0xb0] sm:$0xf] %v1639
        %1768 = vst [vmem:[%s265 + $0xb4] sm:$0xf] %v1640
        %1769 = vst [vmem:[%s265 + $0xb8] sm:$0xf] %v1641
        %1770 = vst [vmem:[%s265 + $0xbc] sm:$0xf] %v1642
        %1771 = vst [vmem:[%s265 + $0xc0] sm:$0xf] %v1643
        %1772 = vst [vmem:[%s265 + $0xc4] sm:$0xf] %v1644
        %1773 = vst [vmem:[%s265 + $0xc8] sm:$0xf] %v1645
        %1774 = vst [vmem:[%s265 + $0xcc] sm:$0xf] %v1646
        %1775 = vst [vmem:[%s265 + $0xd0] sm:$0xf] %v1647
        %1776 = vst [vmem:[%s265 + $0xd4] sm:$0xf] %v1648
        %1777 = vst [vmem:[%s265 + $0xd8] sm:$0xf] %v1649
        %1778 = vst [vmem:[%s265 + $0xdc] sm:$0xf] %v1650
        %1779 = vst [vmem:[%s265 + $0xe0] sm:$0xf] %v1651
        %1780 = vst [vmem:[%s265 + $0xe4] sm:$0xf] %v1652
        %1781 = vst [vmem:[%s265 + $0xe8] sm:$0xf] %v1653
        %1782 = vst [vmem:[%s265 + $0xec] sm:$0xf] %v1654
        %1783 = vst [vmem:[%s265 + $0xf0] sm:$0xf] %v1655
        %1784 = vst [vmem:[%s265 + $0xf4] sm:$0xf] %v1656
        %1785 = vst [vmem:[%s265 + $0xf8] sm:$0xf] %v1657
        %1786 = vst [vmem:[%s265 + $0xfc] sm:$0xf] %v1658
      $region40: #{_conv2d_impl.1} parent=31 // pred_fallthru
        _
      %s1787 = smul.u32 64, %s19
      %p1788 = scmp.lt.s32.totalorder %s1787, 3135
      %s1789 = scalar_select %p1788, %s1787, 3135
      %p1790 = scmp.lt.s32.totalorder %s20, 0
      %s1791 = scalar_select %p1790, %s20, 0
      %s1792 = sadd.s32 %s1791, %s1789
      %s1793 = smul.addr %s1792, 4
      %s1794 = scalar_lea.vmem %s3, %s1793
      // Predicated region
      $region41: #{_conv2d_impl.1} parent=31 // pred_check
        %p1795 = pneg %p135
      $region42: #{_conv2d_impl.1} parent=31 // pred_check_branch
        %1797 = sbr.rel (%p1795) target = $region44
      $region43: #{_conv2d_impl.1} parent=31 // pred_region
        %s1798 = smul.u32 64, %s19
      $region44: #{_conv2d_impl.1} parent=31 // pred_fallthru
        _
    $region32: #{_conv2d_impl.1} parent=5 // pred_fallthru
      _
    %p1799 = scmp.le.s32.totalorder 2, %s9
    // Predicated region
    $region45: #{_conv2d_impl.1} parent=5 // pred_check
      %p1800 = pneg %p1799
    $region46: #{_conv2d_impl.1} parent=5 // pred_check_branch
      %1802 = sbr.rel (%p1800) target = $region48
    $region47: #{_conv2d_impl.1} parent=5 // pred_region
      %s1803 = ssub.s32 %s9, 2
      // Predicated region
      $region49: #{_conv2d_impl.1} parent=47 // pred_check
        %p1804 = pneg %p141
      $region50: #{_conv2d_impl.1} parent=47 // pred_check_branch
        %1806 = sbr.rel (%p1804) target = $region52
      $region51: #{_conv2d_impl.1} parent=47 // pred_region
        %s1807 = smul.u32 64, %s22
        %p1808 = scmp.lt.s32.totalorder %s1807, 3135
        %s1809 = scalar_select %p1808, %s1807, 3135
        %p1810 = scmp.lt.s32.totalorder %s23, 0
        %s1811 = scalar_select %p1810, %s23, 0
        %s1812 = sadd.s32 %s1811, %s1809
        %s1813 = smul.addr %s1812, 4
        %s1814 = scalar_lea.vmem %s3, %s1813
      $region52: #{_conv2d_impl.1} parent=47 // pred_fallthru
        _
    $region48: #{_conv2d_impl.1} parent=5 // pred_fallthru
      _
  $region6: #{_conv2d_impl.1} parent=0 // loop_footer
    %s13 = sadd.s32 1, %s9
  $region7: #{_conv2d_impl.1} parent=0 // loop_footer_branch
    %8 = sbr.rel target = $region3
  $region8: #{_conv2d_impl.1} parent=0 // loop_exit
    _

</llo_original>
